<compile_context>
chip_gen: v7x
topology: tpu7x:2x2x1
jax: 0.10.0
libtpu: 0.0.40
codegen_flags: <defaults>
</compile_context>

<pallas_src>
import functools

import jax
import jax.numpy as jnp
from jax.experimental import pallas as pl
from jax.experimental.pallas import tpu as pltpu


def _coordconvt_kernel(x_ref, w2_ref, b_ref, cr_ref, o_ref, xaug_ref, acc_ref,
                       *, C, n_coord, H, W, KH, KW, Cout, padding):
    """One batch-block of fused AddCoords + ConvTranspose2d (stride=1, 'same')."""
    Bt = x_ref.shape[0]
    S = x_ref.shape[2]                 # H * W  (flattened spatial, lane-dense)

    # Flat spatial index decomposition (tiny grid-invariant table).
    col = cr_ref[0:1, :]               # (1, S) float32, value = ow in [0, W)
    row = cr_ref[1:2, :]               # (1, S) float32, value = oh in [0, H)

    # ---- AddCoords: coordinate channels generated directly in VMEM ----------
    # (Divide-by-zero for H==1 / W==1 mirrors the PyTorch module.)
    xx = (col / jnp.float32(H - 1)) * 2.0 - 1.0
    yy = (row / jnp.float32(W - 1)) * 2.0 - 1.0

    # Augmented input tile (Bt, C + n_coord, S), built in VMEM: the concatenated
    # tensor never round-trips through HBM.
    xaug_ref[:, :C, :] = x_ref[...].astype(jnp.float32)
    xaug_ref[:, C:C + 1, :] = jnp.broadcast_to(xx[None], (Bt, 1, S))
    xaug_ref[:, C + 1:C + 2, :] = jnp.broadcast_to(yy[None], (Bt, 1, S))
    if n_coord == 3:
        rr = jnp.sqrt(xx * xx + yy * yy)
        xaug_ref[:, C + 2:C + 3, :] = jnp.broadcast_to(rr[None], (Bt, 1, S))

    # Column-validity masks (horizontal edges of the transposed conv), one per
    # kw offset; hoisted out of the batch / tap loops.
    colmask = []
    for kw in range(KW):
        lo = kw - padding
        ok = jnp.logical_and(col >= jnp.float32(lo), col < jnp.float32(W + lo))
        colmask.append(ok.astype(jnp.float32))     # (1, S)

    w2 = w2_ref[...]                   # (KH*KW*Cout, C + n_coord), tap-major rows
    acc_ref[...] = jnp.zeros_like(acc_ref)

    for bi in range(Bt):
        # One MXU matmul yields every tap's contribution for this image.
        m = jnp.dot(w2, xaug_ref[bi],
                    preferred_element_type=jnp.float32,
                    precision=jax.lax.Precision.HIGHEST)   # (KH*KW*Cout, S)
        for kh in range(KH):
            for kw in range(KW):
                t = kh * KW + kw
                # Output flat index s reads source flat index s + d.
                d = (padding - kh) * W + (padding - kw)
                lo_s = max(0, -d)
                hi_s = min(S, S - d)
                if hi_s <= lo_s:
                    continue
                contrib = (m[t * Cout:(t + 1) * Cout, lo_s + d:hi_s + d]
                           * colmask[kw][:, lo_s:hi_s])
                acc_ref[bi, :, lo_s:hi_s] += contrib

    # Bias + single merged, lane-dense store of the whole output tile.
    bias = b_ref[...]                  # (Cout, 1)
    o_ref[...] = (acc_ref[...] + bias[None]).astype(o_ref.dtype)


def coord_conv_transpose2d(x, weight, bias, *, stride=1, padding=1,
                           with_r=False, block_b=None):
    """Forward of CoordConvTranspose2d: AddCoords(with_r) -> ConvTranspose2d.

    x      : (B, C, H, W) float32
    weight : (C + n_coord, Cout, KH, KW)   (PyTorch ConvTranspose2d layout)
    bias   : (Cout,)
    """
    B, C, H, W = x.shape
    Cin_aug, Cout, KH, KW = weight.shape
    n_coord = 3 if with_r else 2
    if Cin_aug != C + n_coord:
        raise ValueError("weight in_channels must equal C + (3 if with_r else 2)")
    # TODO(synk): stride > 1, non-'same' padding and output_padding need input
    # dilation / general output windows; not implemented in this fused kernel.
    if stride != 1 or KH != KW or KH % 2 != 1 or padding != (KH - 1) // 2:
        raise NotImplementedError(
            "fused kernel supports stride=1, odd square kernel, padding=(K-1)//2")

    S = H * W
    T2 = KH * KW * Cout

    # Batch block: target ~2 MiB per step, but keep >= 2 grid steps when
    # possible so v7x can shard the 'parallel' axis across its 2 TensorCores.
    if block_b is None:
        per_b_bytes = (C + Cout) * S * 4
        block_b = max(1, min(B, (2 * 1024 * 1024) // max(per_b_bytes, 1)))
        if B >= 2:
            block_b = max(1, min(block_b, B // 2))
        while B % block_b:
            block_b -= 1
    grid = (B // block_b,)

    # Host-side (pure JAX, no kernel work): lane-dense flat view of x, the
    # tap-major weight matrix, bias as a column, and the flat col/row tables.
    x_flat = x.reshape(B, C, S)
    w2 = jnp.transpose(weight, (2, 3, 1, 0)).reshape(T2, Cin_aug)
    w2 = w2.astype(jnp.float32)
    b2 = bias.reshape(Cout, 1).astype(jnp.float32)
    col = jnp.tile(jnp.arange(W, dtype=jnp.float32), H)
    row = jnp.repeat(jnp.arange(H, dtype=jnp.float32), W)
    colrow = jnp.stack([col, row], axis=0)          # (2, S)

    kernel = functools.partial(
        _coordconvt_kernel, C=C, n_coord=n_coord, H=H, W=W,
        KH=KH, KW=KW, Cout=Cout, padding=padding)

    # Explicit VMEM budget: double-buffered in/out tiles + resident weights +
    # scratch, clamped to v7x's smaller physical VMEM.
    io_bytes = block_b * (C + Cout) * S * 4
    scratch_bytes = block_b * (Cin_aug + Cout) * S * 4
    small_bytes = (T2 * Cin_aug + Cout + 2 * S) * 4
    vmem_bytes = 2 * io_bytes + scratch_bytes + small_bytes + (8 << 20)
    vmem_bytes = int(min(max(vmem_bytes, 32 << 20), 64 << 20))

    out_flat = pl.pallas_call(
        kernel,
        out_shape=jax.ShapeDtypeStruct((B, Cout, S), jnp.float32),
        grid_spec=pltpu.PrefetchScalarGridSpec(
            num_scalar_prefetch=0,
            grid=grid,
            in_specs=[
                pl.BlockSpec((block_b, C, S), lambda i: (i, 0, 0)),
                pl.BlockSpec((T2, Cin_aug), lambda i: (0, 0)),
                pl.BlockSpec((Cout, 1), lambda i: (0, 0)),
                pl.BlockSpec((2, S), lambda i: (0, 0)),
            ],
            out_specs=pl.BlockSpec((block_b, Cout, S), lambda i: (i, 0, 0)),
            scratch_shapes=[
                pltpu.VMEM((block_b, Cin_aug, S), jnp.float32),  # augmented input
                pltpu.VMEM((block_b, Cout, S), jnp.float32),     # f32 accumulator
            ],
        ),
        compiler_params=pltpu.CompilerParams(
            dimension_semantics=("parallel",),
            vmem_limit_bytes=vmem_bytes,
        ),
    )(x_flat, w2, b2, colrow)

    return out_flat.reshape(B, Cout, H, W)


def _reference(x, weight, bias, *, padding, with_r):
    """Pure-JAX reference mirroring the PyTorch module exactly."""
    B, C, H, W = x.shape
    col = jnp.broadcast_to(
        jnp.arange(W, dtype=jnp.float32)[None, None, None, :], (B, 1, H, W))
    row = jnp.broadcast_to(
        jnp.arange(H, dtype=jnp.float32)[None, None, :, None], (B, 1, H, W))
    xx = (col / (H - 1)) * 2.0 - 1.0
    yy = (row / (W - 1)) * 2.0 - 1.0
    feats = [x, xx, yy]
    if with_r:
        feats.append(jnp.sqrt(xx ** 2 + yy ** 2))
    x_aug = jnp.concatenate(feats, axis=1)
    # ConvTranspose2d(stride=1, padding=p) == Conv2d with flipped + io-swapped
    # kernel and padding (K-1-p).
    KH, KW = weight.shape[2], weight.shape[3]
    w_conv = jnp.flip(weight, axis=(2, 3)).transpose(1, 0, 2, 3)
    pad = ((KH - 1 - padding,) * 2, (KW - 1 - padding,) * 2)
    y = jax.lax.conv_general_dilated(
        x_aug, w_conv, window_strides=(1, 1), padding=pad,
        dimension_numbers=('NCHW', 'OIHW', 'NCHW'),
        precision=jax.lax.Precision.HIGHEST)
    return y + bias[None, :, None, None]


if __name__ == "__main__":
    key = jax.random.PRNGKey(0)

    configs = [
        # (B, C, H,  W,  Cout, K, padding, with_r)
        (2, 4, 16, 16, 8, 3, 1, True),
        (2, 3, 12, 20, 6, 3, 1, False),
    ]
    for (B, C, H, W, Cout, K, pad_, with_r) in configs:
        n_coord = 3 if with_r else 2
        k1, k2, k3, key = jax.random.split(key, 4)
        x = jax.random.normal(k1, (B, C, H, W), dtype=jnp.float32)
        w = 0.1 * jax.random.normal(k2, (C + n_coord, Cout, K, K),
                                    dtype=jnp.float32)
        b = 0.1 * jax.random.normal(k3, (Cout,), dtype=jnp.float32)

        out = coord_conv_transpose2d(x, w, b, stride=1, padding=pad_,
                                     with_r=with_r)
        out = jax.block_until_ready(out)

        ref = _reference(x, w, b, padding=pad_, with_r=with_r)
        assert out.shape == ref.shape, (out.shape, ref.shape)
        err = float(jnp.max(jnp.abs(out - ref)))
        assert err < 3e-2, f"mismatch vs reference: max abs err = {err}"

    print("KERNEL_OK")
</pallas_src>

<mosaic_0001>
module attributes {stable_mosaic.version = 11 : i64} {
  func.func @_coordconvt_kernel(%arg0: i32, %arg1: memref<1x4x256xf32, #tpu.memory_space<vmem>>, %arg2: memref<72x7xf32, #tpu.memory_space<vmem>>, %arg3: memref<8x1xf32, #tpu.memory_space<vmem>>, %arg4: memref<2x256xf32, #tpu.memory_space<vmem>>, %arg5: memref<1x8x256xf32, #tpu.memory_space<vmem>>, %arg6: memref<1x7x256xf32, #tpu.memory_space<vmem>>, %arg7: memref<1x8x256xf32, #tpu.memory_space<vmem>>) attributes {dimension_semantics = [#tpu.dimension_semantics<parallel>], iteration_bounds = array<i64: 2>, scalar_prefetch = 0 : i64, scratch_operands = 2 : i64, tpu.core_type = #tpu.core_type<tc>, window_params = [{transform_indices = @transform_0, window_bounds = array<i64: 1, 4, 256>}, {pipeline_mode = #tpu.pipeline_mode<synchronous>, transform_indices = @transform_1, window_bounds = array<i64: 72, 7>}, {pipeline_mode = #tpu.pipeline_mode<synchronous>, transform_indices = @transform_2, window_bounds = array<i64: 8, 1>}, {pipeline_mode = #tpu.pipeline_mode<synchronous>, transform_indices = @transform_3, window_bounds = array<i64: 2, 256>}, {transform_indices = @transform_4, window_bounds = array<i64: 1, 8, 256>}]} {
    %c0 = arith.constant 0 : index
    %c0_0 = arith.constant 0 : index
    %0 = vector.load %arg4[%c0, %c0_0] : memref<2x256xf32, #tpu.memory_space<vmem>>, vector<1x256xf32>
    %c1 = arith.constant 1 : index
    %c0_1 = arith.constant 0 : index
    %1 = vector.load %arg4[%c1, %c0_1] : memref<2x256xf32, #tpu.memory_space<vmem>>, vector<1x256xf32>
    %cst = arith.constant 1.500000e+01 : f32
    %2 = vector.broadcast %cst : f32 to vector<1x256xf32>
    %3 = arith.divf %0, %2 : vector<1x256xf32>
    %cst_2 = arith.constant 2.000000e+00 : f32
    %4 = vector.broadcast %cst_2 : f32 to vector<1x256xf32>
    %5 = arith.mulf %3, %4 : vector<1x256xf32>
    %cst_3 = arith.constant 1.000000e+00 : f32
    %6 = vector.broadcast %cst_3 : f32 to vector<1x256xf32>
    %7 = arith.subf %5, %6 : vector<1x256xf32>
    %cst_4 = arith.constant 1.500000e+01 : f32
    %8 = vector.broadcast %cst_4 : f32 to vector<1x256xf32>
    %9 = arith.divf %1, %8 : vector<1x256xf32>
    %cst_5 = arith.constant 2.000000e+00 : f32
    %10 = vector.broadcast %cst_5 : f32 to vector<1x256xf32>
    %11 = arith.mulf %9, %10 : vector<1x256xf32>
    %cst_6 = arith.constant 1.000000e+00 : f32
    %12 = vector.broadcast %cst_6 : f32 to vector<1x256xf32>
    %13 = arith.subf %11, %12 : vector<1x256xf32>
    %c0_7 = arith.constant 0 : index
    %c0_8 = arith.constant 0 : index
    %c0_9 = arith.constant 0 : index
    %14 = vector.load %arg1[%c0_7, %c0_8, %c0_9] : memref<1x4x256xf32, #tpu.memory_space<vmem>>, vector<1x4x256xf32>
    %c0_10 = arith.constant 0 : index
    %c0_11 = arith.constant 0 : index
    %c0_12 = arith.constant 0 : index
    %15 = vector.load %arg6[%c0_10, %c0_11, %c0_12] : memref<1x7x256xf32, #tpu.memory_space<vmem>>, vector<1x4x256xf32>
    tpu.vector_store %arg6[%c0_10, %c0_11, %c0_12], %14 {strides = array<i32>} : memref<1x7x256xf32, #tpu.memory_space<vmem>>, vector<1x4x256xf32>,
    %16 = vector.shape_cast %7 : vector<1x256xf32> to vector<1x1x256xf32>
    %c0_13 = arith.constant 0 : index
    %c4 = arith.constant 4 : index
    %c0_14 = arith.constant 0 : index
    %17 = vector.load %arg6[%c0_13, %c4, %c0_14] : memref<1x7x256xf32, #tpu.memory_space<vmem>>, vector<1x1x256xf32>
    tpu.vector_store %arg6[%c0_13, %c4, %c0_14], %16 {strides = array<i32>} : memref<1x7x256xf32, #tpu.memory_space<vmem>>, vector<1x1x256xf32>,
    %18 = vector.shape_cast %13 : vector<1x256xf32> to vector<1x1x256xf32>
    %c0_15 = arith.constant 0 : index
    %c5 = arith.constant 5 : index
    %c0_16 = arith.constant 0 : index
    %19 = vector.load %arg6[%c0_15, %c5, %c0_16] : memref<1x7x256xf32, #tpu.memory_space<vmem>>, vector<1x1x256xf32>
    tpu.vector_store %arg6[%c0_15, %c5, %c0_16], %18 {strides = array<i32>} : memref<1x7x256xf32, #tpu.memory_space<vmem>>, vector<1x1x256xf32>,
    %20 = arith.mulf %7, %7 : vector<1x256xf32>
    %21 = arith.mulf %13, %13 : vector<1x256xf32>
    %22 = arith.addf %20, %21 : vector<1x256xf32>
    %23 = math.sqrt %22 : vector<1x256xf32>
    %24 = vector.shape_cast %23 : vector<1x256xf32> to vector<1x1x256xf32>
    %c0_17 = arith.constant 0 : index
    %c6 = arith.constant 6 : index
    %c0_18 = arith.constant 0 : index
    %25 = vector.load %arg6[%c0_17, %c6, %c0_18] : memref<1x7x256xf32, #tpu.memory_space<vmem>>, vector<1x1x256xf32>
    tpu.vector_store %arg6[%c0_17, %c6, %c0_18], %24 {strides = array<i32>} : memref<1x7x256xf32, #tpu.memory_space<vmem>>, vector<1x1x256xf32>,
    %cst_19 = arith.constant -1.000000e+00 : f32
    %26 = vector.broadcast %cst_19 : f32 to vector<1x256xf32>
    %27 = arith.cmpf oge, %0, %26 : vector<1x256xf32>
    %cst_20 = arith.constant 1.500000e+01 : f32
    %28 = vector.broadcast %cst_20 : f32 to vector<1x256xf32>
    %29 = arith.cmpf olt, %0, %28 : vector<1x256xf32>
    %30 = arith.andi %27, %29 : vector<1x256xi1>
    %31 = arith.extui %30 : vector<1x256xi1> to vector<1x256xi32>
    %32 = arith.sitofp %31 : vector<1x256xi32> to vector<1x256xf32>
    %cst_21 = arith.constant 0.000000e+00 : f32
    %33 = vector.broadcast %cst_21 : f32 to vector<1x256xf32>
    %34 = arith.cmpf oge, %0, %33 : vector<1x256xf32>
    %cst_22 = arith.constant 1.600000e+01 : f32
    %35 = vector.broadcast %cst_22 : f32 to vector<1x256xf32>
    %36 = arith.cmpf olt, %0, %35 : vector<1x256xf32>
    %37 = arith.andi %34, %36 : vector<1x256xi1>
    %38 = arith.extui %37 : vector<1x256xi1> to vector<1x256xi32>
    %39 = arith.sitofp %38 : vector<1x256xi32> to vector<1x256xf32>
    %cst_23 = arith.constant 1.000000e+00 : f32
    %40 = vector.broadcast %cst_23 : f32 to vector<1x256xf32>
    %41 = arith.cmpf oge, %0, %40 : vector<1x256xf32>
    %cst_24 = arith.constant 1.700000e+01 : f32
    %42 = vector.broadcast %cst_24 : f32 to vector<1x256xf32>
    %43 = arith.cmpf olt, %0, %42 : vector<1x256xf32>
    %44 = arith.andi %41, %43 : vector<1x256xi1>
    %45 = arith.extui %44 : vector<1x256xi1> to vector<1x256xi32>
    %46 = arith.sitofp %45 : vector<1x256xi32> to vector<1x256xf32>
    %c0_25 = arith.constant 0 : index
    %c0_26 = arith.constant 0 : index
    %47 = vector.load %arg2[%c0_25, %c0_26] : memref<72x7xf32, #tpu.memory_space<vmem>>, vector<72x7xf32>
    %cst_27 = arith.constant 0.000000e+00 : f32
    %48 = vector.broadcast %cst_27 : f32 to vector<1x8x256xf32>
    %c0_28 = arith.constant 0 : index
    %c0_29 = arith.constant 0 : index
    %c0_30 = arith.constant 0 : index
    %49 = vector.load %arg7[%c0_28, %c0_29, %c0_30] : memref<1x8x256xf32, #tpu.memory_space<vmem>>, vector<1x8x256xf32>
    tpu.vector_store %arg7[%c0_28, %c0_29, %c0_30], %48 {strides = array<i32>} : memref<1x8x256xf32, #tpu.memory_space<vmem>>, vector<1x8x256xf32>,
    %c0_31 = arith.constant 0 : index
    %c0_32 = arith.constant 0 : index
    %c0_33 = arith.constant 0 : index
    %50 = vector.load %arg6[%c0_31, %c0_32, %c0_33] : memref<1x7x256xf32, #tpu.memory_space<vmem>>, vector<1x7x256xf32>
    %51 = vector.shape_cast %50 : vector<1x7x256xf32> to vector<7x256xf32>
    %cst_34 = arith.constant dense<0.000000e+00> : vector<72x256xf32>
    %52 = tpu.matmul %47, %51, %cst_34 {dimension_numbers = #tpu.dot_dimension_numbers<[1], [0], [0], [1], [0, 0, 1, 1], [], []>, precision = #tpu.contract_precision<fp32>} : vector<72x7xf32>, vector<7x256xf32>, vector<72x256xf32> -> vector<72x256xf32>
    %53 = vector.extract_strided_slice %52 {offsets = [0, 17], sizes = [8, 239], strides = [1, 1]} : vector<72x256xf32> to vector<8x239xf32>
    %54 = vector.extract_strided_slice %32 {offsets = [0, 0], sizes = [1, 239], strides = [1, 1]} : vector<1x256xf32> to vector<1x239xf32>
    %55 = vector.broadcast %54 : vector<1x239xf32> to vector<8x239xf32>
    %56 = arith.mulf %53, %55 : vector<8x239xf32>
    %c0_35 = arith.constant 0 : index
    %c0_36 = arith.constant 0 : index
    %c0_37 = arith.constant 0 : index
    %57 = vector.load %arg7[%c0_35, %c0_36, %c0_37] : memref<1x8x256xf32, #tpu.memory_space<vmem>>, vector<1x8x239xf32>
    %58 = vector.shape_cast %57 : vector<1x8x239xf32> to vector<8x239xf32>
    %59 = arith.addf %58, %56 : vector<8x239xf32>
    %c0_38 = arith.constant 0 : index
    %c0_39 = arith.constant 0 : index
    %c0_40 = arith.constant 0 : index
    %60 = vector.load %arg7[%c0_38, %c0_39, %c0_40] : memref<1x8x256xf32, #tpu.memory_space<vmem>>, vector<1x8x239xf32>
    %61 = vector.shape_cast %60 : vector<1x8x239xf32> to vector<8x239xf32>
    %62 = vector.shape_cast %59 : vector<8x239xf32> to vector<1x8x239xf32>
    tpu.vector_store %arg7[%c0_38, %c0_39, %c0_40], %62 {strides = array<i32>} : memref<1x8x256xf32, #tpu.memory_space<vmem>>, vector<1x8x239xf32>,
    %63 = vector.extract_strided_slice %52 {offsets = [8, 16], sizes = [8, 240], strides = [1, 1]} : vector<72x256xf32> to vector<8x240xf32>
    %64 = vector.extract_strided_slice %39 {offsets = [0, 0], sizes = [1, 240], strides = [1, 1]} : vector<1x256xf32> to vector<1x240xf32>
    %65 = vector.broadcast %64 : vector<1x240xf32> to vector<8x240xf32>
    %66 = arith.mulf %63, %65 : vector<8x240xf32>
    %c0_41 = arith.constant 0 : index
    %c0_42 = arith.constant 0 : index
    %c0_43 = arith.constant 0 : index
    %67 = vector.load %arg7[%c0_41, %c0_42, %c0_43] : memref<1x8x256xf32, #tpu.memory_space<vmem>>, vector<1x8x240xf32>
    %68 = vector.shape_cast %67 : vector<1x8x240xf32> to vector<8x240xf32>
    %69 = arith.addf %68, %66 : vector<8x240xf32>
    %c0_44 = arith.constant 0 : index
    %c0_45 = arith.constant 0 : index
    %c0_46 = arith.constant 0 : index
    %70 = vector.load %arg7[%c0_44, %c0_45, %c0_46] : memref<1x8x256xf32, #tpu.memory_space<vmem>>, vector<1x8x240xf32>
    %71 = vector.shape_cast %70 : vector<1x8x240xf32> to vector<8x240xf32>
    %72 = vector.shape_cast %69 : vector<8x240xf32> to vector<1x8x240xf32>
    tpu.vector_store %arg7[%c0_44, %c0_45, %c0_46], %72 {strides = array<i32>} : memref<1x8x256xf32, #tpu.memory_space<vmem>>, vector<1x8x240xf32>,
    %73 = vector.extract_strided_slice %52 {offsets = [16, 15], sizes = [8, 241], strides = [1, 1]} : vector<72x256xf32> to vector<8x241xf32>
    %74 = vector.extract_strided_slice %46 {offsets = [0, 0], sizes = [1, 241], strides = [1, 1]} : vector<1x256xf32> to vector<1x241xf32>
    %75 = vector.broadcast %74 : vector<1x241xf32> to vector<8x241xf32>
    %76 = arith.mulf %73, %75 : vector<8x241xf32>
    %c0_47 = arith.constant 0 : index
    %c0_48 = arith.constant 0 : index
    %c0_49 = arith.constant 0 : index
    %77 = vector.load %arg7[%c0_47, %c0_48, %c0_49] : memref<1x8x256xf32, #tpu.memory_space<vmem>>, vector<1x8x241xf32>
    %78 = vector.shape_cast %77 : vector<1x8x241xf32> to vector<8x241xf32>
    %79 = arith.addf %78, %76 : vector<8x241xf32>
    %c0_50 = arith.constant 0 : index
    %c0_51 = arith.constant 0 : index
    %c0_52 = arith.constant 0 : index
    %80 = vector.load %arg7[%c0_50, %c0_51, %c0_52] : memref<1x8x256xf32, #tpu.memory_space<vmem>>, vector<1x8x241xf32>
    %81 = vector.shape_cast %80 : vector<1x8x241xf32> to vector<8x241xf32>
    %82 = vector.shape_cast %79 : vector<8x241xf32> to vector<1x8x241xf32>
    tpu.vector_store %arg7[%c0_50, %c0_51, %c0_52], %82 {strides = array<i32>} : memref<1x8x256xf32, #tpu.memory_space<vmem>>, vector<1x8x241xf32>,
    %83 = vector.extract_strided_slice %52 {offsets = [24, 1], sizes = [8, 255], strides = [1, 1]} : vector<72x256xf32> to vector<8x255xf32>
    %84 = vector.extract_strided_slice %32 {offsets = [0, 0], sizes = [1, 255], strides = [1, 1]} : vector<1x256xf32> to vector<1x255xf32>
    %85 = vector.broadcast %84 : vector<1x255xf32> to vector<8x255xf32>
    %86 = arith.mulf %83, %85 : vector<8x255xf32>
    %c0_53 = arith.constant 0 : index
    %c0_54 = arith.constant 0 : index
    %c0_55 = arith.constant 0 : index
    %87 = vector.load %arg7[%c0_53, %c0_54, %c0_55] : memref<1x8x256xf32, #tpu.memory_space<vmem>>, vector<1x8x255xf32>
    %88 = vector.shape_cast %87 : vector<1x8x255xf32> to vector<8x255xf32>
    %89 = arith.addf %88, %86 : vector<8x255xf32>
    %c0_56 = arith.constant 0 : index
    %c0_57 = arith.constant 0 : index
    %c0_58 = arith.constant 0 : index
    %90 = vector.load %arg7[%c0_56, %c0_57, %c0_58] : memref<1x8x256xf32, #tpu.memory_space<vmem>>, vector<1x8x255xf32>
    %91 = vector.shape_cast %90 : vector<1x8x255xf32> to vector<8x255xf32>
    %92 = vector.shape_cast %89 : vector<8x255xf32> to vector<1x8x255xf32>
    tpu.vector_store %arg7[%c0_56, %c0_57, %c0_58], %92 {strides = array<i32>} : memref<1x8x256xf32, #tpu.memory_space<vmem>>, vector<1x8x255xf32>,
    %93 = vector.extract_strided_slice %52 {offsets = [32, 0], sizes = [8, 256], strides = [1, 1]} : vector<72x256xf32> to vector<8x256xf32>
    %94 = vector.broadcast %39 : vector<1x256xf32> to vector<8x256xf32>
    %95 = arith.mulf %93, %94 : vector<8x256xf32>
    %c0_59 = arith.constant 0 : index
    %c0_60 = arith.constant 0 : index
    %c0_61 = arith.constant 0 : index
    %96 = vector.load %arg7[%c0_59, %c0_60, %c0_61] : memref<1x8x256xf32, #tpu.memory_space<vmem>>, vector<1x8x256xf32>
    %97 = vector.shape_cast %96 : vector<1x8x256xf32> to vector<8x256xf32>
    %98 = arith.addf %97, %95 : vector<8x256xf32>
    %c0_62 = arith.constant 0 : index
    %c0_63 = arith.constant 0 : index
    %c0_64 = arith.constant 0 : index
    %99 = vector.load %arg7[%c0_62, %c0_63, %c0_64] : memref<1x8x256xf32, #tpu.memory_space<vmem>>, vector<1x8x256xf32>
    %100 = vector.shape_cast %99 : vector<1x8x256xf32> to vector<8x256xf32>
    %101 = vector.shape_cast %98 : vector<8x256xf32> to vector<1x8x256xf32>
    tpu.vector_store %arg7[%c0_62, %c0_63, %c0_64], %101 {strides = array<i32>} : memref<1x8x256xf32, #tpu.memory_space<vmem>>, vector<1x8x256xf32>,
    %102 = vector.extract_strided_slice %52 {offsets = [40, 0], sizes = [8, 255], strides = [1, 1]} : vector<72x256xf32> to vector<8x255xf32>
    %103 = vector.extract_strided_slice %46 {offsets = [0, 1], sizes = [1, 255], strides = [1, 1]} : vector<1x256xf32> to vector<1x255xf32>
    %104 = vector.broadcast %103 : vector<1x255xf32> to vector<8x255xf32>
    %105 = arith.mulf %102, %104 : vector<8x255xf32>
    %c0_65 = arith.constant 0 : index
    %c0_66 = arith.constant 0 : index
    %c1_67 = arith.constant 1 : index
    %106 = vector.load %arg7[%c0_65, %c0_66, %c1_67] : memref<1x8x256xf32, #tpu.memory_space<vmem>>, vector<1x8x255xf32>
    %107 = vector.shape_cast %106 : vector<1x8x255xf32> to vector<8x255xf32>
    %108 = arith.addf %107, %105 : vector<8x255xf32>
    %c0_68 = arith.constant 0 : index
    %c0_69 = arith.constant 0 : index
    %c1_70 = arith.constant 1 : index
    %109 = vector.load %arg7[%c0_68, %c0_69, %c1_70] : memref<1x8x256xf32, #tpu.memory_space<vmem>>, vector<1x8x255xf32>
    %110 = vector.shape_cast %109 : vector<1x8x255xf32> to vector<8x255xf32>
    %111 = vector.shape_cast %108 : vector<8x255xf32> to vector<1x8x255xf32>
    tpu.vector_store %arg7[%c0_68, %c0_69, %c1_70], %111 {strides = array<i32>} : memref<1x8x256xf32, #tpu.memory_space<vmem>>, vector<1x8x255xf32>,
    %112 = vector.extract_strided_slice %52 {offsets = [48, 0], sizes = [8, 241], strides = [1, 1]} : vector<72x256xf32> to vector<8x241xf32>
    %113 = vector.extract_strided_slice %32 {offsets = [0, 15], sizes = [1, 241], strides = [1, 1]} : vector<1x256xf32> to vector<1x241xf32>
    %114 = vector.broadcast %113 : vector<1x241xf32> to vector<8x241xf32>
    %115 = arith.mulf %112, %114 : vector<8x241xf32>
    %c0_71 = arith.constant 0 : index
    %c0_72 = arith.constant 0 : index
    %c15 = arith.constant 15 : index
    %116 = vector.load %arg7[%c0_71, %c0_72, %c15] : memref<1x8x256xf32, #tpu.memory_space<vmem>>, vector<1x8x241xf32>
    %117 = vector.shape_cast %116 : vector<1x8x241xf32> to vector<8x241xf32>
    %118 = arith.addf %117, %115 : vector<8x241xf32>
    %c0_73 = arith.constant 0 : index
    %c0_74 = arith.constant 0 : index
    %c15_75 = arith.constant 15 : index
    %119 = vector.load %arg7[%c0_73, %c0_74, %c15_75] : memref<1x8x256xf32, #tpu.memory_space<vmem>>, vector<1x8x241xf32>
    %120 = vector.shape_cast %119 : vector<1x8x241xf32> to vector<8x241xf32>
    %121 = vector.shape_cast %118 : vector<8x241xf32> to vector<1x8x241xf32>
    tpu.vector_store %arg7[%c0_73, %c0_74, %c15_75], %121 {strides = array<i32>} : memref<1x8x256xf32, #tpu.memory_space<vmem>>, vector<1x8x241xf32>,
    %122 = vector.extract_strided_slice %52 {offsets = [56, 0], sizes = [8, 240], strides = [1, 1]} : vector<72x256xf32> to vector<8x240xf32>
    %123 = vector.extract_strided_slice %39 {offsets = [0, 16], sizes = [1, 240], strides = [1, 1]} : vector<1x256xf32> to vector<1x240xf32>
    %124 = vector.broadcast %123 : vector<1x240xf32> to vector<8x240xf32>
    %125 = arith.mulf %122, %124 : vector<8x240xf32>
    %c0_76 = arith.constant 0 : index
    %c0_77 = arith.constant 0 : index
    %c16 = arith.constant 16 : index
    %126 = vector.load %arg7[%c0_76, %c0_77, %c16] : memref<1x8x256xf32, #tpu.memory_space<vmem>>, vector<1x8x240xf32>
    %127 = vector.shape_cast %126 : vector<1x8x240xf32> to vector<8x240xf32>
    %128 = arith.addf %127, %125 : vector<8x240xf32>
    %c0_78 = arith.constant 0 : index
    %c0_79 = arith.constant 0 : index
    %c16_80 = arith.constant 16 : index
    %129 = vector.load %arg7[%c0_78, %c0_79, %c16_80] : memref<1x8x256xf32, #tpu.memory_space<vmem>>, vector<1x8x240xf32>
    %130 = vector.shape_cast %129 : vector<1x8x240xf32> to vector<8x240xf32>
    %131 = vector.shape_cast %128 : vector<8x240xf32> to vector<1x8x240xf32>
    tpu.vector_store %arg7[%c0_78, %c0_79, %c16_80], %131 {strides = array<i32>} : memref<1x8x256xf32, #tpu.memory_space<vmem>>, vector<1x8x240xf32>,
    %132 = vector.extract_strided_slice %52 {offsets = [64, 0], sizes = [8, 239], strides = [1, 1]} : vector<72x256xf32> to vector<8x239xf32>
    %133 = vector.extract_strided_slice %46 {offsets = [0, 17], sizes = [1, 239], strides = [1, 1]} : vector<1x256xf32> to vector<1x239xf32>
    %134 = vector.broadcast %133 : vector<1x239xf32> to vector<8x239xf32>
    %135 = arith.mulf %132, %134 : vector<8x239xf32>
    %c0_81 = arith.constant 0 : index
    %c0_82 = arith.constant 0 : index
    %c17 = arith.constant 17 : index
    %136 = vector.load %arg7[%c0_81, %c0_82, %c17] : memref<1x8x256xf32, #tpu.memory_space<vmem>>, vector<1x8x239xf32>
    %137 = vector.shape_cast %136 : vector<1x8x239xf32> to vector<8x239xf32>
    %138 = arith.addf %137, %135 : vector<8x239xf32>
    %c0_83 = arith.constant 0 : index
    %c0_84 = arith.constant 0 : index
    %c17_85 = arith.constant 17 : index
    %139 = vector.load %arg7[%c0_83, %c0_84, %c17_85] : memref<1x8x256xf32, #tpu.memory_space<vmem>>, vector<1x8x239xf32>
    %140 = vector.shape_cast %139 : vector<1x8x239xf32> to vector<8x239xf32>
    %141 = vector.shape_cast %138 : vector<8x239xf32> to vector<1x8x239xf32>
    tpu.vector_store %arg7[%c0_83, %c0_84, %c17_85], %141 {strides = array<i32>} : memref<1x8x256xf32, #tpu.memory_space<vmem>>, vector<1x8x239xf32>,
    %c0_86 = arith.constant 0 : index
    %c0_87 = arith.constant 0 : index
    %142 = vector.load %arg3[%c0_86, %c0_87] : memref<8x1xf32, #tpu.memory_space<vmem>>, vector<8x1xf32>
    %c0_88 = arith.constant 0 : index
    %c0_89 = arith.constant 0 : index
    %c0_90 = arith.constant 0 : index
    %143 = vector.load %arg7[%c0_88, %c0_89, %c0_90] : memref<1x8x256xf32, #tpu.memory_space<vmem>>, vector<1x8x256xf32>
    %144 = vector.shape_cast %142 : vector<8x1xf32> to vector<1x8x1xf32>
    %145 = vector.broadcast %144 : vector<1x8x1xf32> to vector<1x8x256xf32>
    %146 = arith.addf %143, %145 : vector<1x8x256xf32>
    %c0_91 = arith.constant 0 : index
    %c0_92 = arith.constant 0 : index
    %c0_93 = arith.constant 0 : index
    %147 = vector.load %arg5[%c0_91, %c0_92, %c0_93] : memref<1x8x256xf32, #tpu.memory_space<vmem>>, vector<1x8x256xf32>
    tpu.vector_store %arg5[%c0_91, %c0_92, %c0_93], %146 {strides = array<i32>} : memref<1x8x256xf32, #tpu.memory_space<vmem>>, vector<1x8x256xf32>,
    return
  }
  func.func @transform_0(%arg0: i32) -> (i32, i32, i32) {
    %c0_i32 = arith.constant 0 : i32
    %c0_i32_0 = arith.constant 0 : i32
    %c0_i32_1 = arith.constant 0 : i32
    return %arg0, %c0_i32, %c0_i32_0 : i32, i32, i32
  }
  func.func @transform_1(%arg0: i32) -> (i32, i32) {
    %c0_i32 = arith.constant 0 : i32
    %c0_i32_0 = arith.constant 0 : i32
    %c0_i32_1 = arith.constant 0 : i32
    return %c0_i32, %c0_i32_0 : i32, i32
  }
  func.func @transform_2(%arg0: i32) -> (i32, i32) {
    %c0_i32 = arith.constant 0 : i32
    %c0_i32_0 = arith.constant 0 : i32
    %c0_i32_1 = arith.constant 0 : i32
    return %c0_i32, %c0_i32_0 : i32, i32
  }
  func.func @transform_3(%arg0: i32) -> (i32, i32) {
    %c0_i32 = arith.constant 0 : i32
    %c0_i32_0 = arith.constant 0 : i32
    %c0_i32_1 = arith.constant 0 : i32
    return %c0_i32, %c0_i32_0 : i32, i32
  }
  func.func @transform_4(%arg0: i32) -> (i32, i32, i32) {
    %c0_i32 = arith.constant 0 : i32
    %c0_i32_0 = arith.constant 0 : i32
    %c0_i32_1 = arith.constant 0 : i32
    return %arg0, %c0_i32, %c0_i32_0 : i32, i32, i32
  }
}

</mosaic_0001>

<llo_original>
// kernel: tpu_custom_call.1
$region0: #{tpu_custom_call.1}
  #allocation0 [shape = 'u32[]', space=smem, size = 0x4, offset = 0x4, fixed_abs, tag = 'smem constant byte address 0x4 - core index']
  #allocation1 [shape = 'u32[144,128]{1,0:T(1,128)}', space=vmem, size = 0x12000, scoped, tag = 'internal scratch']
  #allocation2 [shape = 'f32[1,7,256]{2,1,0:T(8,128)}', space=vmem, size = 0x2000, scoped, tag = 'scratch operand']
  #allocation3 [shape = 'f32[1,8,256]{2,1,0:T(8,128)}', space=vmem, size = 0x2000, scoped, tag = 'scratch operand']
  %s0 = inlined_call_operand.vmem [shape: f32[2,4,256], index: 0, kind: input, shape index: {}]
  %s1 = inlined_call_operand.vmem [shape: f32[72,7], index: 1, kind: input, shape index: {}]
  %s2 = inlined_call_operand.vmem [shape: f32[8,1], index: 2, kind: input, shape index: {}]
  %s3 = inlined_call_operand.vmem [shape: f32[2,256], index: 3, kind: input, shape index: {}]
  %s4 = inlined_call_operand.hbm [shape: f32[2,8,256], index: 4, kind: output, shape index: {}]
  %s5 = sld [smem:[#allocation0]]
  $region49: #{tpu_custom_call.1} parent=0
    _
  %s7 = ssub.s32 1, %s5
  %s8 = scalar_select 0, %s7, %s5
  $region1: #{tpu_custom_call.1} parent=0
    #allocation4 [shape = 'u8[16384]{0}', space=vmem, size = 0x4000, scoped, tag = 'output window, operand 0']
    #allocation5 [shape = 's32[2]{0}', space=sflag, size = 0x8, scoped, tag = 'scoped memory for tpu_custom_call.1']
    %9 = vsyncpa [#allocation5], 0
    %s10 = scalar_lea.sflag [#allocation5], 1
    %11 = vsyncpa %s10, 0
    loop: start=0, step=1, limit=4
    $region2: #{tpu_custom_call.1} parent=1 // loop_pre_header
      _
    $region3: #{tpu_custom_call.1} parent=1 // loop_header
      %s13 = sphi 0, %s17
      %p14 = scmp.ge.s32.totalorder %s13, 4
      %s23 = sphi 0, %s25
      %s26 = sphi 0, %s23
      %s27 = sphi 0, %s26
      %s43 = sphi 0, %s27
      %s47 = sphi 0, %s47
      %s49 = sphi 0, %s47
      %s50 = sphi 0, %s49
      %s64 = sphi 0, %s50
      %s68 = sphi 0, %s68
      %s70 = sphi 0, %s68
      %s71 = sphi 0, %s70
      %s85 = sphi 0, %s71
      %s89 = sphi 0, %s89
      %s91 = sphi 0, %s89
      %s92 = sphi 0, %s91
      %s106 = sphi 0, %s92
      %s112 = sphi 0, %s114
      %s115 = sphi 0, %s112
      %s116 = sphi 0, %s115
      %s132 = sphi 0, %s116
    $region4: #{tpu_custom_call.1} parent=1 // loop_header_branch
      %16 = sbr.rel (%p14) target = $region8
    $region5: #{tpu_custom_call.1} parent=1 // loop_body
      %s18 = ssub.s32 %s13, 1
      %s19 = ssub.s32 %s13, 2
      %s20 = sadd.s32 %s13, 1
      %s21 = ssub.s32 %s13, %s20
      %p22 = scmp.eq.s32.totalorder %s21, 0
      %s24 = sadd.s32 %s23, 1
      %s25 = scalar_select %p22, %s23, %s24
      %p28 = pneg %p22
      %p29 = scmp.eq.s32.totalorder %s13, 1
      %p30 = por %p28, %p29
      %p31 = scmp.ne.s32.totalorder %s23, %s26
      %p32 = scmp.eq.s32.totalorder %s13, 0
      %p33 = por %p31, %p32
      %p34 = scmp.ne.s32.totalorder %s23, %s26
      %p35 = scmp.eq.s32.totalorder %s18, 1
      %p36 = por %p34, %p35
      %p37 = scmp.ne.s32.totalorder %s26, %s27
      %p38 = scmp.eq.s32.totalorder %s18, 0
      %p39 = por %p37, %p38
      %p40 = scmp.ne.s32.totalorder %s26, %s27
      %p41 = scmp.eq.s32.totalorder %s19, 1
      %p42 = por %p40, %p41
      %p44 = scmp.ne.s32.totalorder %s27, %s43
      %p45 = scmp.eq.s32.totalorder %s19, 0
      %p46 = por %p44, %p45
      %s48 = sadd.s32 %s47, 1
      %p51 = scmp.eq.s32.totalorder %s13, 1
      %p52 = scmp.ne.s32.totalorder %s47, %s49
      %p53 = scmp.eq.s32.totalorder %s13, 0
      %p54 = por %p52, %p53
      %p55 = scmp.ne.s32.totalorder %s47, %s49
      %p56 = scmp.eq.s32.totalorder %s18, 1
      %p57 = por %p55, %p56
      %p58 = scmp.ne.s32.totalorder %s49, %s50
      %p59 = scmp.eq.s32.totalorder %s18, 0
      %p60 = por %p58, %p59
      %p61 = scmp.ne.s32.totalorder %s49, %s50
      %p62 = scmp.eq.s32.totalorder %s19, 1
      %p63 = por %p61, %p62
      %p65 = scmp.ne.s32.totalorder %s50, %s64
      %p66 = scmp.eq.s32.totalorder %s19, 0
      %p67 = por %p65, %p66
      %s69 = sadd.s32 %s68, 1
      %p72 = scmp.eq.s32.totalorder %s13, 1
      %p73 = scmp.ne.s32.totalorder %s68, %s70
      %p74 = scmp.eq.s32.totalorder %s13, 0
      %p75 = por %p73, %p74
      %p76 = scmp.ne.s32.totalorder %s68, %s70
      %p77 = scmp.eq.s32.totalorder %s18, 1
      %p78 = por %p76, %p77
      %p79 = scmp.ne.s32.totalorder %s70, %s71
      %p80 = scmp.eq.s32.totalorder %s18, 0
      %p81 = por %p79, %p80
      %p82 = scmp.ne.s32.totalorder %s70, %s71
      %p83 = scmp.eq.s32.totalorder %s19, 1
      %p84 = por %p82, %p83
      %p86 = scmp.ne.s32.totalorder %s71, %s85
      %p87 = scmp.eq.s32.totalorder %s19, 0
      %p88 = por %p86, %p87
      %s90 = sadd.s32 %s89, 1
      %p93 = scmp.eq.s32.totalorder %s13, 1
      %p94 = scmp.ne.s32.totalorder %s89, %s91
      %p95 = scmp.eq.s32.totalorder %s13, 0
      %p96 = por %p94, %p95
      %p97 = scmp.ne.s32.totalorder %s89, %s91
      %p98 = scmp.eq.s32.totalorder %s18, 1
      %p99 = por %p97, %p98
      %p100 = scmp.ne.s32.totalorder %s91, %s92
      %p101 = scmp.eq.s32.totalorder %s18, 0
      %p102 = por %p100, %p101
      %p103 = scmp.ne.s32.totalorder %s91, %s92
      %p104 = scmp.eq.s32.totalorder %s19, 1
      %p105 = por %p103, %p104
      %p107 = scmp.ne.s32.totalorder %s92, %s106
      %p108 = scmp.eq.s32.totalorder %s19, 0
      %p109 = por %p107, %p108
      %s110 = ssub.s32 %s13, %s20
      %p111 = scmp.eq.s32.totalorder %s110, 0
      %s113 = sadd.s32 %s112, 1
      %s114 = scalar_select %p111, %s112, %s113
      %p117 = pneg %p111
      %p118 = scmp.eq.s32.totalorder %s13, 1
      %p119 = por %p117, %p118
      %p120 = scmp.ne.s32.totalorder %s112, %s115
      %p121 = scmp.eq.s32.totalorder %s13, 0
      %p122 = por %p120, %p121
      %p123 = scmp.ne.s32.totalorder %s112, %s115
      %p124 = scmp.eq.s32.totalorder %s18, 1
      %p125 = por %p123, %p124
      %p126 = scmp.ne.s32.totalorder %s115, %s116
      %p127 = scmp.eq.s32.totalorder %s18, 0
      %p128 = por %p126, %p127
      %p129 = scmp.ne.s32.totalorder %s115, %s116
      %p130 = scmp.eq.s32.totalorder %s19, 1
      %p131 = por %p129, %p130
      %p133 = scmp.ne.s32.totalorder %s116, %s132
      %p134 = scmp.eq.s32.totalorder %s19, 0
      %p135 = por %p133, %p134
      %p136 = scmp.le.s32.totalorder 1, %s13
      %p137 = scmp.lt.s32.totalorder %s13, 3
      %p138 = pnand %p136, %p137
      %p139 = pneg %p138
      // Predicated region
      $region9: #{tpu_custom_call.1} parent=5 // pred_check
        _
      $region10: #{tpu_custom_call.1} parent=5 // pred_check_branch
        %141 = sbr.rel (%p138) target = $region12
      $region11: #{tpu_custom_call.1} parent=5 // pred_region
        %s142 = ssub.s32 %s13, 1
        // Predicated region
        $region13: #{tpu_custom_call.1} parent=11 // pred_check
          %p143 = pneg %p60
        $region14: #{tpu_custom_call.1} parent=11 // pred_check_branch
          %145 = sbr.rel (%p143) target = $region16
        $region15: #{tpu_custom_call.1} parent=11 // pred_region
          _
        $region16: #{tpu_custom_call.1} parent=11 // pred_fallthru
          _
        // Predicated region
        $region17: #{tpu_custom_call.1} parent=11 // pred_check
          %p146 = pneg %p81
        $region18: #{tpu_custom_call.1} parent=11 // pred_check_branch
          %148 = sbr.rel (%p146) target = $region20
        $region19: #{tpu_custom_call.1} parent=11 // pred_region
          _
        $region20: #{tpu_custom_call.1} parent=11 // pred_fallthru
          _
        // Predicated region
        $region21: #{tpu_custom_call.1} parent=11 // pred_check
          %p149 = pneg %p102
        $region22: #{tpu_custom_call.1} parent=11 // pred_check_branch
          %151 = sbr.rel (%p149) target = $region24
        $region23: #{tpu_custom_call.1} parent=11 // pred_region
          _
        $region24: #{tpu_custom_call.1} parent=11 // pred_fallthru
          _
      $region12: #{tpu_custom_call.1} parent=5 // pred_fallthru
        _
      %p152 = scmp.lt.s32.totalorder %s13, 2
      // Predicated region
      $region25: #{tpu_custom_call.1} parent=5 // pred_check
        %p153 = pneg %p152
      $region26: #{tpu_custom_call.1} parent=5 // pred_check_branch
        %155 = sbr.rel (%p153) target = $region28
      $region27: #{tpu_custom_call.1} parent=5 // pred_region
        // Predicated region
        $region29: #{tpu_custom_call.1} parent=27 // pred_check
          %p156 = pneg %p33
        $region30: #{tpu_custom_call.1} parent=27 // pred_check_branch
          %158 = sbr.rel (%p156) target = $region32
        $region31: #{tpu_custom_call.1} parent=27 // pred_region
          %p159 = scmp.lt.s32.totalorder %s13, 1
          %s160 = scalar_select %p159, %s13, 1
          %s161 = smul.addr %s160, 2
          %s162 = smul.addr %s161, 4
          %s163 = scalar_lea.vmem %s0, %s162
        $region32: #{tpu_custom_call.1} parent=27 // pred_fallthru
          _
      $region28: #{tpu_custom_call.1} parent=5 // pred_fallthru
        _
      %p164 = scmp.le.s32.totalorder 1, %s13
      %p165 = scmp.lt.s32.totalorder %s13, 3
      %p166 = pnand %p164, %p165
      %p167 = pneg %p166
      // Predicated region
      $region33: #{tpu_custom_call.1} parent=5 // pred_check
        _
      $region34: #{tpu_custom_call.1} parent=5 // pred_check_branch
        %169 = sbr.rel (%p166) target = $region36
      $region35: #{tpu_custom_call.1} parent=5 // pred_region
        %s170 = ssub.s32 %s13, 1
        %p171 = scmp.lt.s32.totalorder %s18, 1
        %s172 = scalar_select %p171, %s18, 1
        %s173 = smul.addr %s172, 2
        %s174 = smul.addr %s173, 4
        %s175 = scalar_lea.vmem %s0, %s174
        %p176 = pneg %p39
        %p177 = pneg %p36
        %p178 = pneg %p60
        %p179 = pneg %p57
        %p180 = pneg %p81
        %p181 = pneg %p78
        %p182 = pneg %p102
        %p183 = pneg %p99
        %p184 = pneg %p128
        %p185 = pneg %p125
        %s186 = sand.u32 %s115, 1
        %s187 = scalar_lea.sflag [#allocation5], %s186
        %s188 = sand.u32 %s115, 1
        %s189 = smul.addr %s188, 16
        %s190 = scalar_lea.vmem [#allocation4], %s189
        %p191 = scmp.lt.s32.totalorder %s18, 1
        %s192 = scalar_select %p191, %s18, 1
        %s193 = smul.addr %s192, 2
        %s194 = smul.addr %s193, 4
        %s195 = scalar_lea.vmem %s0, %s194
        %v196 = vld [vmem:[%s3] ss:$2 sm:$0x3]
        %s197 = scalar_lea.vmem %s3, 1
        %v198 = vld [vmem:[%s197] ss:$2 sm:$0x3]
        %v199 = vrcp.pop 15.0
        %v200 = vmul.f32 %v196, %v199
        %v201 = vmul.f32 %v200, 2.0
        %v202 = vsub.f32 %v201, 1.0
        %v203 = vmul.f32 %v198, %v199
        %v204 = vmul.f32 %v203, 2.0
        %v205 = vsub.f32 %v204, 1.0
        %v206 = vld [vmem:[%s195] sm:$0xff]
        %v208 = vcombine.high %v206, %v206
        %210 = vst [vmem:[#allocation2] sm:$0xf] %v206
        %211 = vst [vmem:[#allocation2 + $0x8] sm:$0xf] %v208
        %v212 = vlaneseq
        %vm213 = vcmp.ge.s32.totalorder %v212, 0
        %vm214 = vcmp.lt.s32.totalorder %v212, 256
        %vm215 = vmand %vm213, %vm214
        %s216 = scalar_lea.vmem [#allocation2], 4
        %217 = vst.msk [vmem:[%s216] ss:$8 sm:$0x3] %vm215, %v202
        %218 = vst.msk [vmem:[%s216] ss:$8 sm:$0x0] %vm215, %v202
        %s219 = scalar_lea.vmem [#allocation2], 5
        %220 = vst.msk [vmem:[%s219] ss:$8 sm:$0x3] %vm215, %v205
        %221 = vst.msk [vmem:[%s219] ss:$8 sm:$0x0] %vm215, %v205
        %v222 = vmul.f32 %v202, %v202
        %v223 = vmul.f32 %v205, %v205
        %v224 = vadd.f32 %v222, %v223
        %v225 = vrsqrt.pop %v224
        %v226 = vmul.f32 %v224, %v225
        %vm227 = vcmp.eq.f32.partialorder %v224, inf
        %v228 = vsel %vm227, %v224, %v226
        %vm229 = vcmp.eq.f32.partialorder %v224, 0.0
        %v230 = vand.u32 %v224, 2147483648
        %v231 = vsel %vm229, %v230, %v228
        %s232 = scalar_lea.vmem [#allocation2], 6
        %233 = vst.msk [vmem:[%s232] ss:$8 sm:$0x3] %vm215, %v231
        %234 = vst.msk [vmem:[%s232] ss:$8 sm:$0x0] %vm215, %v231
        %vm235 = vcmp.ge.f32.partialorder %v196, -1.0
        %vm236 = vcmp.lt.f32.partialorder %v196, 15.0
        %vm237 = vmand %vm235, %vm236
        %v238 = vsel %vm237, 1, 0
        %v239 = vcvt.s32.f32 %v238
        %vm240 = vcmp.ge.f32.partialorder %v196, 0.0
        %vm241 = vcmp.lt.f32.partialorder %v196, 16.0
        %vm242 = vmand %vm240, %vm241
        %v243 = vsel %vm242, 1, 0
        %v244 = vcvt.s32.f32 %v243
        %vm245 = vcmp.ge.f32.partialorder %v196, 1.0
        %vm246 = vcmp.lt.f32.partialorder %v196, 17.0
        %vm247 = vmand %vm245, %vm246
        %v248 = vsel %vm247, 1, 0
        %v249 = vcvt.s32.f32 %v248
        %v250 = vld [vmem:[%s1] sm:$0xff]
        %v251 = vld [vmem:[%s1 + $0x8] sm:$0xff]
        %v252 = vld [vmem:[%s1 + $0x10] sm:$0xff]
        %v253 = vld [vmem:[%s1 + $0x18] sm:$0xff]
        %v254 = vld [vmem:[%s1 + $0x20] sm:$0xff]
        %v255 = vld [vmem:[%s1 + $0x28] sm:$0xff]
        %v256 = vld [vmem:[%s1 + $0x30] sm:$0xff]
        %v257 = vld [vmem:[%s1 + $0x38] sm:$0xff]
        %v258 = vld [vmem:[%s1 + $0x40] sm:$0xff]
        %259 = vst [vmem:[#allocation3] sm:$0xff] 0.0
        %260 = vst [vmem:[#allocation3 + $0x8] sm:$0xff] 0.0
        %v261 = vld [vmem:[#allocation2] sm:$0x7f]
        %v262 = vld [vmem:[#allocation2 + $0x8] sm:$0x7f]
        %vm263 = vcmask 56320
        %v265 = vsel %vm263, %v250, 0
        %v268 = vsel %vm263, %v251, 0
        %v271 = vsel %vm263, %v252, 0
        %v274 = vsel %vm263, %v253, 0
        %v277 = vsel %vm263, %v254, 0
        %v280 = vsel %vm263, %v255, 0
        %v283 = vsel %vm263, %v256, 0
        %v286 = vsel %vm263, %v257, 0
        %v289 = vsel %vm263, %v258, 0
        %vm291 = vcmask 1046528
        %v293 = vsel %vm291, %v261, 0
        %v296 = vsel %vm291, %v262, 0
        %v298 = vand.u32 %v296, 4294901760
        %299 = vmatprep.subr.mxu0 %v298
        %v300 = vand.u32 %v293, 4294901760
        %301 = vmatpush1.msra.mxu0 %v300
        %302 = vmatprep.subr.mxu0 0.0
        %303 = vmatpush1.msra.mxu0 0.0
        %304 = vmatprep.subr.mxu0 0.0
        %305 = vmatpush1.msra.mxu0 0.0
        %306 = vmatprep.subr.mxu0 0.0
        %307 = vmatpush1.msra.mxu0 0.0
        %308 = vmatprep.subr.mxu0 0.0
        %309 = vmatpush1.msra.mxu0 0.0
        %310 = vmatprep.subr.mxu0 0.0
        %311 = vmatpush1.msra.mxu0 0.0
        %312 = vmatprep.subr.mxu0 0.0
        %313 = vmatpush1.msra.mxu0 0.0
        %314 = vmatprep.subr.mxu0 0.0
        %315 = vmatpush1.msra.mxu0 0.0
        %316 = vmatprep.subr.mxu0 0.0
        %317 = vmatpush1.msra.mxu0 0.0
        %318 = vmatprep.subr.mxu0 0.0
        %319 = vmatpush1.msra.mxu0 0.0
        %320 = vmatprep.subr.mxu0 0.0
        %321 = vmatpush1.msra.mxu0 0.0
        %322 = vmatprep.subr.mxu0 0.0
        %323 = vmatpush1.msra.mxu0 0.0
        %324 = vmatprep.subr.mxu0 0.0
        %325 = vmatpush1.msra.mxu0 0.0
        %326 = vmatprep.subr.mxu0 0.0
        %327 = vmatpush1.msra.mxu0 0.0
        %328 = vmatprep.subr.mxu0 0.0
        %329 = vmatpush1.msra.mxu0 0.0
        %330 = vmatprep.subr.mxu0 0.0
        %331 = vmatpush1.msra.mxu0 0.0
        %332 = vmatprep.subr.mxu0 0.0
        %333 = vmatpush1.msra.mxu0 0.0
        %334 = vmatprep.subr.mxu0 0.0
        %335 = vmatpush1.msra.mxu0 0.0
        %336 = vmatprep.subr.mxu0 0.0
        %337 = vmatpush1.msra.mxu0 0.0
        %338 = vmatprep.subr.mxu0 0.0
        %339 = vmatpush1.msra.mxu0 0.0
        %340 = vmatprep.subr.mxu0 0.0
        %341 = vmatpush1.msra.mxu0 0.0
        %342 = vmatprep.subr.mxu0 0.0
        %343 = vmatpush1.msra.mxu0 0.0
        %344 = vmatprep.subr.mxu0 0.0
        %345 = vmatpush1.msra.mxu0 0.0
        %346 = vmatprep.subr.mxu0 0.0
        %347 = vmatpush1.msra.mxu0 0.0
        %348 = vmatprep.subr.mxu0 0.0
        %349 = vmatpush1.msra.mxu0 0.0
        %350 = vmatprep.subr.mxu0 0.0
        %351 = vmatpush1.msra.mxu0 0.0
        %352 = vmatprep.subr.mxu0 0.0
        %353 = vmatpush1.msra.mxu0 0.0
        %354 = vmatprep.subr.mxu0 0.0
        %355 = vmatpush1.msra.mxu0 0.0
        %356 = vmatprep.subr.mxu0 0.0
        %357 = vmatpush1.msra.mxu0 0.0
        %358 = vmatprep.subr.mxu0 0.0
        %359 = vmatpush1.msra.mxu0 0.0
        %360 = vmatprep.subr.mxu0 0.0
        %361 = vmatpush1.msra.mxu0 0.0
        %362 = vmatprep.subr.mxu0 0.0
        %363 = vmatpush1.msra.mxu0 0.0
        %364 = vmatprep.mubr.f32.mxu0 0.0
        %v365 = vand.u32 %v265, 4294901760
        %v366 = vsub.f32 %v265, %v365
        %v367 = vand.u32 %v366, 4294901760
        %v368 = vsub.f32 %v366, %v367
        %v369 = vand.u32 %v368, 4294901760
        %370 = vmatmul.mubr.f32.gmra.mrb[0].mxu0 %v369
        %v371 = vpop.f32.mrb[0].mxu0
        %v372 = vadd.f32 0.0, %v371
        %v373 = vpop.f32.mrb[0].mxu0
        %v374 = vadd.f32 0.0, %v373
        %375 = vmatprep.mubr.f32.mxu0 0.0
        %v376 = vand.u32 %v268, 4294901760
        %v377 = vsub.f32 %v268, %v376
        %v378 = vand.u32 %v377, 4294901760
        %v379 = vsub.f32 %v377, %v378
        %v380 = vand.u32 %v379, 4294901760
        %381 = vmatmul.mubr.f32.gmra.mrb[0].mxu0 %v380
        %v382 = vpop.f32.mrb[0].mxu0
        %v383 = vadd.f32 0.0, %v382
        %v384 = vpop.f32.mrb[0].mxu0
        %v385 = vadd.f32 0.0, %v384
        %386 = vmatprep.mubr.f32.mxu0 0.0
        %v387 = vand.u32 %v271, 4294901760
        %v388 = vsub.f32 %v271, %v387
        %v389 = vand.u32 %v388, 4294901760
        %v390 = vsub.f32 %v388, %v389
        %v391 = vand.u32 %v390, 4294901760
        %392 = vmatmul.mubr.f32.gmra.mrb[0].mxu0 %v391
        %v393 = vpop.f32.mrb[0].mxu0
        %v394 = vadd.f32 0.0, %v393
        %v395 = vpop.f32.mrb[0].mxu0
        %v396 = vadd.f32 0.0, %v395
        %397 = vmatprep.mubr.f32.mxu0 0.0
        %v398 = vand.u32 %v274, 4294901760
        %v399 = vsub.f32 %v274, %v398
        %v400 = vand.u32 %v399, 4294901760
        %v401 = vsub.f32 %v399, %v400
        %v402 = vand.u32 %v401, 4294901760
        %403 = vmatmul.mubr.f32.gmra.mrb[0].mxu0 %v402
        %v404 = vpop.f32.mrb[0].mxu0
        %v405 = vadd.f32 0.0, %v404
        %v406 = vpop.f32.mrb[0].mxu0
        %v407 = vadd.f32 0.0, %v406
        %408 = vmatprep.mubr.f32.mxu0 0.0
        %v409 = vand.u32 %v277, 4294901760
        %v410 = vsub.f32 %v277, %v409
        %v411 = vand.u32 %v410, 4294901760
        %v412 = vsub.f32 %v410, %v411
        %v413 = vand.u32 %v412, 4294901760
        %414 = vmatmul.mubr.f32.gmra.mrb[0].mxu0 %v413
        %v415 = vpop.f32.mrb[0].mxu0
        %v416 = vadd.f32 0.0, %v415
        %v417 = vpop.f32.mrb[0].mxu0
        %v418 = vadd.f32 0.0, %v417
        %419 = vmatprep.mubr.f32.mxu0 0.0
        %v420 = vand.u32 %v280, 4294901760
        %v421 = vsub.f32 %v280, %v420
        %v422 = vand.u32 %v421, 4294901760
        %v423 = vsub.f32 %v421, %v422
        %v424 = vand.u32 %v423, 4294901760
        %425 = vmatmul.mubr.f32.gmra.mrb[0].mxu0 %v424
        %v426 = vpop.f32.mrb[0].mxu0
        %v427 = vadd.f32 0.0, %v426
        %v428 = vpop.f32.mrb[0].mxu0
        %v429 = vadd.f32 0.0, %v428
        %430 = vmatprep.mubr.f32.mxu0 0.0
        %v431 = vand.u32 %v283, 4294901760
        %v432 = vsub.f32 %v283, %v431
        %v433 = vand.u32 %v432, 4294901760
        %v434 = vsub.f32 %v432, %v433
        %v435 = vand.u32 %v434, 4294901760
        %436 = vmatmul.mubr.f32.gmra.mrb[0].mxu0 %v435
        %v437 = vpop.f32.mrb[0].mxu0
        %v438 = vadd.f32 0.0, %v437
        %v439 = vpop.f32.mrb[0].mxu0
        %v440 = vadd.f32 0.0, %v439
        %441 = vmatprep.mubr.f32.mxu0 0.0
        %v442 = vand.u32 %v286, 4294901760
        %v443 = vsub.f32 %v286, %v442
        %v444 = vand.u32 %v443, 4294901760
        %v445 = vsub.f32 %v443, %v444
        %v446 = vand.u32 %v445, 4294901760
        %447 = vmatmul.mubr.f32.gmra.mrb[0].mxu0 %v446
        %v448 = vpop.f32.mrb[0].mxu0
        %v449 = vadd.f32 0.0, %v448
        %v450 = vpop.f32.mrb[0].mxu0
        %v451 = vadd.f32 0.0, %v450
        %452 = vmatprep.mubr.f32.mxu0 0.0
        %v453 = vand.u32 %v289, 4294901760
        %v454 = vsub.f32 %v289, %v453
        %v455 = vand.u32 %v454, 4294901760
        %v456 = vsub.f32 %v454, %v455
        %v457 = vand.u32 %v456, 4294901760
        %458 = vmatmul.mubr.f32.gmra.mrb[0].mxu0 %v457
        %v459 = vpop.f32.mrb[0].mxu0
        %v460 = vadd.f32 0.0, %v459
        %v461 = vpop.f32.mrb[0].mxu0
        %v462 = vadd.f32 0.0, %v461
        %463 = vdwg.mxu0
        %v464 = vand.u32 %v296, 4294901760
        %v465 = vsub.f32 %v296, %v464
        %v466 = vand.u32 %v465, 4294901760
        %v467 = vsub.f32 %v465, %v466
        %v468 = vand.u32 %v467, 4294901760
        %469 = vmatprep.subr.mxu0 %v468
        %v470 = vand.u32 %v293, 4294901760
        %v471 = vsub.f32 %v293, %v470
        %v472 = vand.u32 %v471, 4294901760
        %v473 = vsub.f32 %v471, %v472
        %v474 = vand.u32 %v473, 4294901760
        %475 = vmatpush1.msra.mxu0 %v474
        %476 = vmatprep.subr.mxu0 0.0
        %477 = vmatpush1.msra.mxu0 0.0
        %478 = vmatprep.subr.mxu0 0.0
        %479 = vmatpush1.msra.mxu0 0.0
        %480 = vmatprep.subr.mxu0 0.0
        %481 = vmatpush1.msra.mxu0 0.0
        %482 = vmatprep.subr.mxu0 0.0
        %483 = vmatpush1.msra.mxu0 0.0
        %484 = vmatprep.subr.mxu0 0.0
        %485 = vmatpush1.msra.mxu0 0.0
        %486 = vmatprep.subr.mxu0 0.0
        %487 = vmatpush1.msra.mxu0 0.0
        %488 = vmatprep.subr.mxu0 0.0
        %489 = vmatpush1.msra.mxu0 0.0
        %490 = vmatprep.subr.mxu0 0.0
        %491 = vmatpush1.msra.mxu0 0.0
        %492 = vmatprep.subr.mxu0 0.0
        %493 = vmatpush1.msra.mxu0 0.0
        %494 = vmatprep.subr.mxu0 0.0
        %495 = vmatpush1.msra.mxu0 0.0
        %496 = vmatprep.subr.mxu0 0.0
        %497 = vmatpush1.msra.mxu0 0.0
        %498 = vmatprep.subr.mxu0 0.0
        %499 = vmatpush1.msra.mxu0 0.0
        %500 = vmatprep.subr.mxu0 0.0
        %501 = vmatpush1.msra.mxu0 0.0
        %502 = vmatprep.subr.mxu0 0.0
        %503 = vmatpush1.msra.mxu0 0.0
        %504 = vmatprep.subr.mxu0 0.0
        %505 = vmatpush1.msra.mxu0 0.0
        %506 = vmatprep.subr.mxu0 0.0
        %507 = vmatpush1.msra.mxu0 0.0
        %508 = vmatprep.subr.mxu0 0.0
        %509 = vmatpush1.msra.mxu0 0.0
        %510 = vmatprep.subr.mxu0 0.0
        %511 = vmatpush1.msra.mxu0 0.0
        %512 = vmatprep.subr.mxu0 0.0
        %513 = vmatpush1.msra.mxu0 0.0
        %514 = vmatprep.subr.mxu0 0.0
        %515 = vmatpush1.msra.mxu0 0.0
        %516 = vmatprep.subr.mxu0 0.0
        %517 = vmatpush1.msra.mxu0 0.0
        %518 = vmatprep.subr.mxu0 0.0
        %519 = vmatpush1.msra.mxu0 0.0
        %520 = vmatprep.subr.mxu0 0.0
        %521 = vmatpush1.msra.mxu0 0.0
        %522 = vmatprep.subr.mxu0 0.0
        %523 = vmatpush1.msra.mxu0 0.0
        %524 = vmatprep.subr.mxu0 0.0
        %525 = vmatpush1.msra.mxu0 0.0
        %526 = vmatprep.subr.mxu0 0.0
        %527 = vmatpush1.msra.mxu0 0.0
        %528 = vmatprep.subr.mxu0 0.0
        %529 = vmatpush1.msra.mxu0 0.0
        %530 = vmatprep.subr.mxu0 0.0
        %531 = vmatpush1.msra.mxu0 0.0
        %532 = vmatprep.subr.mxu0 0.0
        %533 = vmatpush1.msra.mxu0 0.0
        %534 = vmatprep.subr.mxu0 0.0
        %535 = vmatpush1.msra.mxu0 0.0
        %536 = vmatprep.subr.mxu0 0.0
        %537 = vmatpush1.msra.mxu0 0.0
        %538 = vmatprep.mubr.f32.mxu0 0.0
        %v539 = vand.u32 %v265, 4294901760
        %540 = vmatmul.mubr.f32.gmra.mrb[0].mxu0 %v539
        %v541 = vpop.f32.mrb[0].mxu0
        %v542 = vadd.f32 %v372, %v541
        %v543 = vpop.f32.mrb[0].mxu0
        %v544 = vadd.f32 %v374, %v543
        %545 = vmatprep.mubr.f32.mxu0 0.0
        %v546 = vand.u32 %v268, 4294901760
        %547 = vmatmul.mubr.f32.gmra.mrb[0].mxu0 %v546
        %v548 = vpop.f32.mrb[0].mxu0
        %v549 = vadd.f32 %v383, %v548
        %v550 = vpop.f32.mrb[0].mxu0
        %v551 = vadd.f32 %v385, %v550
        %552 = vmatprep.mubr.f32.mxu0 0.0
        %v553 = vand.u32 %v271, 4294901760
        %554 = vmatmul.mubr.f32.gmra.mrb[0].mxu0 %v553
        %v555 = vpop.f32.mrb[0].mxu0
        %v556 = vadd.f32 %v394, %v555
        %v557 = vpop.f32.mrb[0].mxu0
        %v558 = vadd.f32 %v396, %v557
        %559 = vmatprep.mubr.f32.mxu0 0.0
        %v560 = vand.u32 %v274, 4294901760
        %561 = vmatmul.mubr.f32.gmra.mrb[0].mxu0 %v560
        %v562 = vpop.f32.mrb[0].mxu0
        %v563 = vadd.f32 %v405, %v562
        %v564 = vpop.f32.mrb[0].mxu0
        %v565 = vadd.f32 %v407, %v564
        %566 = vmatprep.mubr.f32.mxu0 0.0
        %v567 = vand.u32 %v277, 4294901760
        %568 = vmatmul.mubr.f32.gmra.mrb[0].mxu0 %v567
        %v569 = vpop.f32.mrb[0].mxu0
        %v570 = vadd.f32 %v416, %v569
        %v571 = vpop.f32.mrb[0].mxu0
        %v572 = vadd.f32 %v418, %v571
        %573 = vmatprep.mubr.f32.mxu0 0.0
        %v574 = vand.u32 %v280, 4294901760
        %575 = vmatmul.mubr.f32.gmra.mrb[0].mxu0 %v574
        %v576 = vpop.f32.mrb[0].mxu0
        %v577 = vadd.f32 %v427, %v576
        %v578 = vpop.f32.mrb[0].mxu0
        %v579 = vadd.f32 %v429, %v578
        %580 = vmatprep.mubr.f32.mxu0 0.0
        %v581 = vand.u32 %v283, 4294901760
        %582 = vmatmul.mubr.f32.gmra.mrb[0].mxu0 %v581
        %v583 = vpop.f32.mrb[0].mxu0
        %v584 = vadd.f32 %v438, %v583
        %v585 = vpop.f32.mrb[0].mxu0
        %v586 = vadd.f32 %v440, %v585
        %587 = vmatprep.mubr.f32.mxu0 0.0
        %v588 = vand.u32 %v286, 4294901760
        %589 = vmatmul.mubr.f32.gmra.mrb[0].mxu0 %v588
        %v590 = vpop.f32.mrb[0].mxu0
        %v591 = vadd.f32 %v449, %v590
        %v592 = vpop.f32.mrb[0].mxu0
        %v593 = vadd.f32 %v451, %v592
        %594 = vmatprep.mubr.f32.mxu0 0.0
        %v595 = vand.u32 %v289, 4294901760
        %596 = vmatmul.mubr.f32.gmra.mrb[0].mxu0 %v595
        %v597 = vpop.f32.mrb[0].mxu0
        %v598 = vadd.f32 %v460, %v597
        %v599 = vpop.f32.mrb[0].mxu0
        %v600 = vadd.f32 %v462, %v599
        %601 = vdwg.mxu0
        %v602 = vand.u32 %v296, 4294901760
        %v603 = vsub.f32 %v296, %v602
        %604 = vmatprep.subr.mxu0 %v603
        %v605 = vand.u32 %v293, 4294901760
        %v606 = vsub.f32 %v293, %v605
        %607 = vmatpush1.msra.mxu0 %v606
        %608 = vmatprep.subr.mxu0 0.0
        %609 = vmatpush1.msra.mxu0 0.0
        %610 = vmatprep.subr.mxu0 0.0
        %611 = vmatpush1.msra.mxu0 0.0
        %612 = vmatprep.subr.mxu0 0.0
        %613 = vmatpush1.msra.mxu0 0.0
        %614 = vmatprep.subr.mxu0 0.0
        %615 = vmatpush1.msra.mxu0 0.0
        %616 = vmatprep.subr.mxu0 0.0
        %617 = vmatpush1.msra.mxu0 0.0
        %618 = vmatprep.subr.mxu0 0.0
        %619 = vmatpush1.msra.mxu0 0.0
        %620 = vmatprep.subr.mxu0 0.0
        %621 = vmatpush1.msra.mxu0 0.0
        %622 = vmatprep.subr.mxu0 0.0
        %623 = vmatpush1.msra.mxu0 0.0
        %624 = vmatprep.subr.mxu0 0.0
        %625 = vmatpush1.msra.mxu0 0.0
        %626 = vmatprep.subr.mxu0 0.0
        %627 = vmatpush1.msra.mxu0 0.0
        %628 = vmatprep.subr.mxu0 0.0
        %629 = vmatpush1.msra.mxu0 0.0
        %630 = vmatprep.subr.mxu0 0.0
        %631 = vmatpush1.msra.mxu0 0.0
        %632 = vmatprep.subr.mxu0 0.0
        %633 = vmatpush1.msra.mxu0 0.0
        %634 = vmatprep.subr.mxu0 0.0
        %635 = vmatpush1.msra.mxu0 0.0
        %636 = vmatprep.subr.mxu0 0.0
        %637 = vmatpush1.msra.mxu0 0.0
        %638 = vmatprep.subr.mxu0 0.0
        %639 = vmatpush1.msra.mxu0 0.0
        %640 = vmatprep.subr.mxu0 0.0
        %641 = vmatpush1.msra.mxu0 0.0
        %642 = vmatprep.subr.mxu0 0.0
        %643 = vmatpush1.msra.mxu0 0.0
        %644 = vmatprep.subr.mxu0 0.0
        %645 = vmatpush1.msra.mxu0 0.0
        %646 = vmatprep.subr.mxu0 0.0
        %647 = vmatpush1.msra.mxu0 0.0
        %648 = vmatprep.subr.mxu0 0.0
        %649 = vmatpush1.msra.mxu0 0.0
        %650 = vmatprep.subr.mxu0 0.0
        %651 = vmatpush1.msra.mxu0 0.0
        %652 = vmatprep.subr.mxu0 0.0
        %653 = vmatpush1.msra.mxu0 0.0
        %654 = vmatprep.subr.mxu0 0.0
        %655 = vmatpush1.msra.mxu0 0.0
        %656 = vmatprep.subr.mxu0 0.0
        %657 = vmatpush1.msra.mxu0 0.0
        %658 = vmatprep.subr.mxu0 0.0
        %659 = vmatpush1.msra.mxu0 0.0
        %660 = vmatprep.subr.mxu0 0.0
        %661 = vmatpush1.msra.mxu0 0.0
        %662 = vmatprep.subr.mxu0 0.0
        %663 = vmatpush1.msra.mxu0 0.0
        %664 = vmatprep.subr.mxu0 0.0
        %665 = vmatpush1.msra.mxu0 0.0
        %666 = vmatprep.subr.mxu0 0.0
        %667 = vmatpush1.msra.mxu0 0.0
        %668 = vmatprep.subr.mxu0 0.0
        %669 = vmatpush1.msra.mxu0 0.0
        %670 = vmatprep.mubr.f32.mxu0 0.0
        %v671 = vand.u32 %v265, 4294901760
        %v672 = vsub.f32 %v265, %v671
        %673 = vmatmul.mubr.f32.gmra.mrb[0].mxu0 %v672
        %v674 = vpop.f32.mrb[0].mxu0
        %v675 = vadd.f32 %v542, %v674
        %v676 = vpop.f32.mrb[0].mxu0
        %v677 = vadd.f32 %v544, %v676
        %678 = vmatprep.mubr.f32.mxu0 0.0
        %v679 = vand.u32 %v268, 4294901760
        %v680 = vsub.f32 %v268, %v679
        %681 = vmatmul.mubr.f32.gmra.mrb[0].mxu0 %v680
        %v682 = vpop.f32.mrb[0].mxu0
        %v683 = vadd.f32 %v549, %v682
        %v684 = vpop.f32.mrb[0].mxu0
        %v685 = vadd.f32 %v551, %v684
        %686 = vmatprep.mubr.f32.mxu0 0.0
        %v687 = vand.u32 %v271, 4294901760
        %v688 = vsub.f32 %v271, %v687
        %689 = vmatmul.mubr.f32.gmra.mrb[0].mxu0 %v688
        %v690 = vpop.f32.mrb[0].mxu0
        %v691 = vadd.f32 %v556, %v690
        %v692 = vpop.f32.mrb[0].mxu0
        %v693 = vadd.f32 %v558, %v692
        %694 = vmatprep.mubr.f32.mxu0 0.0
        %v695 = vand.u32 %v274, 4294901760
        %v696 = vsub.f32 %v274, %v695
        %697 = vmatmul.mubr.f32.gmra.mrb[0].mxu0 %v696
        %v698 = vpop.f32.mrb[0].mxu0
        %v699 = vadd.f32 %v563, %v698
        %v700 = vpop.f32.mrb[0].mxu0
        %v701 = vadd.f32 %v565, %v700
        %702 = vmatprep.mubr.f32.mxu0 0.0
        %v703 = vand.u32 %v277, 4294901760
        %v704 = vsub.f32 %v277, %v703
        %705 = vmatmul.mubr.f32.gmra.mrb[0].mxu0 %v704
        %v706 = vpop.f32.mrb[0].mxu0
        %v707 = vadd.f32 %v570, %v706
        %v708 = vpop.f32.mrb[0].mxu0
        %v709 = vadd.f32 %v572, %v708
        %710 = vmatprep.mubr.f32.mxu0 0.0
        %v711 = vand.u32 %v280, 4294901760
        %v712 = vsub.f32 %v280, %v711
        %713 = vmatmul.mubr.f32.gmra.mrb[0].mxu0 %v712
        %v714 = vpop.f32.mrb[0].mxu0
        %v715 = vadd.f32 %v577, %v714
        %v716 = vpop.f32.mrb[0].mxu0
        %v717 = vadd.f32 %v579, %v716
        %718 = vmatprep.mubr.f32.mxu0 0.0
        %v719 = vand.u32 %v283, 4294901760
        %v720 = vsub.f32 %v283, %v719
        %721 = vmatmul.mubr.f32.gmra.mrb[0].mxu0 %v720
        %v722 = vpop.f32.mrb[0].mxu0
        %v723 = vadd.f32 %v584, %v722
        %v724 = vpop.f32.mrb[0].mxu0
        %v725 = vadd.f32 %v586, %v724
        %726 = vmatprep.mubr.f32.mxu0 0.0
        %v727 = vand.u32 %v286, 4294901760
        %v728 = vsub.f32 %v286, %v727
        %729 = vmatmul.mubr.f32.gmra.mrb[0].mxu0 %v728
        %v730 = vpop.f32.mrb[0].mxu0
        %v731 = vadd.f32 %v591, %v730
        %v732 = vpop.f32.mrb[0].mxu0
        %v733 = vadd.f32 %v593, %v732
        %734 = vmatprep.mubr.f32.mxu0 0.0
        %v735 = vand.u32 %v289, 4294901760
        %v736 = vsub.f32 %v289, %v735
        %737 = vmatmul.mubr.f32.gmra.mrb[0].mxu0 %v736
        %v738 = vpop.f32.mrb[0].mxu0
        %v739 = vadd.f32 %v598, %v738
        %v740 = vpop.f32.mrb[0].mxu0
        %v741 = vadd.f32 %v600, %v740
        %742 = vdwg.mxu0
        %v743 = vand.u32 %v296, 4294901760
        %744 = vmatprep.subr.mxu0 %v743
        %v745 = vand.u32 %v293, 4294901760
        %746 = vmatpush1.msra.mxu0 %v745
        %747 = vmatprep.subr.mxu0 0.0
        %748 = vmatpush1.msra.mxu0 0.0
        %749 = vmatprep.subr.mxu0 0.0
        %750 = vmatpush1.msra.mxu0 0.0
        %751 = vmatprep.subr.mxu0 0.0
        %752 = vmatpush1.msra.mxu0 0.0
        %753 = vmatprep.subr.mxu0 0.0
        %754 = vmatpush1.msra.mxu0 0.0
        %755 = vmatprep.subr.mxu0 0.0
        %756 = vmatpush1.msra.mxu0 0.0
        %757 = vmatprep.subr.mxu0 0.0
        %758 = vmatpush1.msra.mxu0 0.0
        %759 = vmatprep.subr.mxu0 0.0
        %760 = vmatpush1.msra.mxu0 0.0
        %761 = vmatprep.subr.mxu0 0.0
        %762 = vmatpush1.msra.mxu0 0.0
        %763 = vmatprep.subr.mxu0 0.0
        %764 = vmatpush1.msra.mxu0 0.0
        %765 = vmatprep.subr.mxu0 0.0
        %766 = vmatpush1.msra.mxu0 0.0
        %767 = vmatprep.subr.mxu0 0.0
        %768 = vmatpush1.msra.mxu0 0.0
        %769 = vmatprep.subr.mxu0 0.0
        %770 = vmatpush1.msra.mxu0 0.0
        %771 = vmatprep.subr.mxu0 0.0
        %772 = vmatpush1.msra.mxu0 0.0
        %773 = vmatprep.subr.mxu0 0.0
        %774 = vmatpush1.msra.mxu0 0.0
        %775 = vmatprep.subr.mxu0 0.0
        %776 = vmatpush1.msra.mxu0 0.0
        %777 = vmatprep.subr.mxu0 0.0
        %778 = vmatpush1.msra.mxu0 0.0
        %779 = vmatprep.subr.mxu0 0.0
        %780 = vmatpush1.msra.mxu0 0.0
        %781 = vmatprep.subr.mxu0 0.0
        %782 = vmatpush1.msra.mxu0 0.0
        %783 = vmatprep.subr.mxu0 0.0
        %784 = vmatpush1.msra.mxu0 0.0
        %785 = vmatprep.subr.mxu0 0.0
        %786 = vmatpush1.msra.mxu0 0.0
        %787 = vmatprep.subr.mxu0 0.0
        %788 = vmatpush1.msra.mxu0 0.0
        %789 = vmatprep.subr.mxu0 0.0
        %790 = vmatpush1.msra.mxu0 0.0
        %791 = vmatprep.subr.mxu0 0.0
        %792 = vmatpush1.msra.mxu0 0.0
        %793 = vmatprep.subr.mxu0 0.0
        %794 = vmatpush1.msra.mxu0 0.0
        %795 = vmatprep.subr.mxu0 0.0
        %796 = vmatpush1.msra.mxu0 0.0
        %797 = vmatprep.subr.mxu0 0.0
        %798 = vmatpush1.msra.mxu0 0.0
        %799 = vmatprep.subr.mxu0 0.0
        %800 = vmatpush1.msra.mxu0 0.0
        %801 = vmatprep.subr.mxu0 0.0
        %802 = vmatpush1.msra.mxu0 0.0
        %803 = vmatprep.subr.mxu0 0.0
        %804 = vmatpush1.msra.mxu0 0.0
        %805 = vmatprep.subr.mxu0 0.0
        %806 = vmatpush1.msra.mxu0 0.0
        %807 = vmatprep.subr.mxu0 0.0
        %808 = vmatpush1.msra.mxu0 0.0
        %809 = vmatprep.mubr.f32.mxu0 0.0
        %v810 = vand.u32 %v265, 4294901760
        %v811 = vsub.f32 %v265, %v810
        %v812 = vand.u32 %v811, 4294901760
        %813 = vmatmul.mubr.f32.gmra.mrb[0].mxu0 %v812
        %v814 = vpop.f32.mrb[0].mxu0
        %v815 = vadd.f32 %v675, %v814
        %v816 = vpop.f32.mrb[0].mxu0
        %v817 = vadd.f32 %v677, %v816
        %818 = vmatprep.mubr.f32.mxu0 0.0
        %v819 = vand.u32 %v268, 4294901760
        %v820 = vsub.f32 %v268, %v819
        %v821 = vand.u32 %v820, 4294901760
        %822 = vmatmul.mubr.f32.gmra.mrb[0].mxu0 %v821
        %v823 = vpop.f32.mrb[0].mxu0
        %v824 = vadd.f32 %v683, %v823
        %v825 = vpop.f32.mrb[0].mxu0
        %v826 = vadd.f32 %v685, %v825
        %827 = vmatprep.mubr.f32.mxu0 0.0
        %v828 = vand.u32 %v271, 4294901760
        %v829 = vsub.f32 %v271, %v828
        %v830 = vand.u32 %v829, 4294901760
        %831 = vmatmul.mubr.f32.gmra.mrb[0].mxu0 %v830
        %v832 = vpop.f32.mrb[0].mxu0
        %v833 = vadd.f32 %v691, %v832
        %v834 = vpop.f32.mrb[0].mxu0
        %v835 = vadd.f32 %v693, %v834
        %836 = vmatprep.mubr.f32.mxu0 0.0
        %v837 = vand.u32 %v274, 4294901760
        %v838 = vsub.f32 %v274, %v837
        %v839 = vand.u32 %v838, 4294901760
        %840 = vmatmul.mubr.f32.gmra.mrb[0].mxu0 %v839
        %v841 = vpop.f32.mrb[0].mxu0
        %v842 = vadd.f32 %v699, %v841
        %v843 = vpop.f32.mrb[0].mxu0
        %v844 = vadd.f32 %v701, %v843
        %845 = vmatprep.mubr.f32.mxu0 0.0
        %v846 = vand.u32 %v277, 4294901760
        %v847 = vsub.f32 %v277, %v846
        %v848 = vand.u32 %v847, 4294901760
        %849 = vmatmul.mubr.f32.gmra.mrb[0].mxu0 %v848
        %v850 = vpop.f32.mrb[0].mxu0
        %v851 = vadd.f32 %v707, %v850
        %v852 = vpop.f32.mrb[0].mxu0
        %v853 = vadd.f32 %v709, %v852
        %854 = vmatprep.mubr.f32.mxu0 0.0
        %v855 = vand.u32 %v280, 4294901760
        %v856 = vsub.f32 %v280, %v855
        %v857 = vand.u32 %v856, 4294901760
        %858 = vmatmul.mubr.f32.gmra.mrb[0].mxu0 %v857
        %v859 = vpop.f32.mrb[0].mxu0
        %v860 = vadd.f32 %v715, %v859
        %v861 = vpop.f32.mrb[0].mxu0
        %v862 = vadd.f32 %v717, %v861
        %863 = vmatprep.mubr.f32.mxu0 0.0
        %v864 = vand.u32 %v283, 4294901760
        %v865 = vsub.f32 %v283, %v864
        %v866 = vand.u32 %v865, 4294901760
        %867 = vmatmul.mubr.f32.gmra.mrb[0].mxu0 %v866
        %v868 = vpop.f32.mrb[0].mxu0
        %v869 = vadd.f32 %v723, %v868
        %v870 = vpop.f32.mrb[0].mxu0
        %v871 = vadd.f32 %v725, %v870
        %872 = vmatprep.mubr.f32.mxu0 0.0
        %v873 = vand.u32 %v286, 4294901760
        %v874 = vsub.f32 %v286, %v873
        %v875 = vand.u32 %v874, 4294901760
        %876 = vmatmul.mubr.f32.gmra.mrb[0].mxu0 %v875
        %v877 = vpop.f32.mrb[0].mxu0
        %v878 = vadd.f32 %v731, %v877
        %v879 = vpop.f32.mrb[0].mxu0
        %v880 = vadd.f32 %v733, %v879
        %881 = vmatprep.mubr.f32.mxu0 0.0
        %v882 = vand.u32 %v289, 4294901760
        %v883 = vsub.f32 %v289, %v882
        %v884 = vand.u32 %v883, 4294901760
        %885 = vmatmul.mubr.f32.gmra.mrb[0].mxu0 %v884
        %v886 = vpop.f32.mrb[0].mxu0
        %v887 = vadd.f32 %v739, %v886
        %v888 = vpop.f32.mrb[0].mxu0
        %v889 = vadd.f32 %v741, %v888
        %890 = vdwg.mxu0
        %v891 = vand.u32 %v296, 4294901760
        %v892 = vsub.f32 %v296, %v891
        %v893 = vand.u32 %v892, 4294901760
        %894 = vmatprep.subr.mxu0 %v893
        %v895 = vand.u32 %v293, 4294901760
        %v896 = vsub.f32 %v293, %v895
        %v897 = vand.u32 %v896, 4294901760
        %898 = vmatpush1.msra.mxu0 %v897
        %899 = vmatprep.subr.mxu0 0.0
        %900 = vmatpush1.msra.mxu0 0.0
        %901 = vmatprep.subr.mxu0 0.0
        %902 = vmatpush1.msra.mxu0 0.0
        %903 = vmatprep.subr.mxu0 0.0
        %904 = vmatpush1.msra.mxu0 0.0
        %905 = vmatprep.subr.mxu0 0.0
        %906 = vmatpush1.msra.mxu0 0.0
        %907 = vmatprep.subr.mxu0 0.0
        %908 = vmatpush1.msra.mxu0 0.0
        %909 = vmatprep.subr.mxu0 0.0
        %910 = vmatpush1.msra.mxu0 0.0
        %911 = vmatprep.subr.mxu0 0.0
        %912 = vmatpush1.msra.mxu0 0.0
        %913 = vmatprep.subr.mxu0 0.0
        %914 = vmatpush1.msra.mxu0 0.0
        %915 = vmatprep.subr.mxu0 0.0
        %916 = vmatpush1.msra.mxu0 0.0
        %917 = vmatprep.subr.mxu0 0.0
        %918 = vmatpush1.msra.mxu0 0.0
        %919 = vmatprep.subr.mxu0 0.0
        %920 = vmatpush1.msra.mxu0 0.0
        %921 = vmatprep.subr.mxu0 0.0
        %922 = vmatpush1.msra.mxu0 0.0
        %923 = vmatprep.subr.mxu0 0.0
        %924 = vmatpush1.msra.mxu0 0.0
        %925 = vmatprep.subr.mxu0 0.0
        %926 = vmatpush1.msra.mxu0 0.0
        %927 = vmatprep.subr.mxu0 0.0
        %928 = vmatpush1.msra.mxu0 0.0
        %929 = vmatprep.subr.mxu0 0.0
        %930 = vmatpush1.msra.mxu0 0.0
        %931 = vmatprep.subr.mxu0 0.0
        %932 = vmatpush1.msra.mxu0 0.0
        %933 = vmatprep.subr.mxu0 0.0
        %934 = vmatpush1.msra.mxu0 0.0
        %935 = vmatprep.subr.mxu0 0.0
        %936 = vmatpush1.msra.mxu0 0.0
        %937 = vmatprep.subr.mxu0 0.0
        %938 = vmatpush1.msra.mxu0 0.0
        %939 = vmatprep.subr.mxu0 0.0
        %940 = vmatpush1.msra.mxu0 0.0
        %941 = vmatprep.subr.mxu0 0.0
        %942 = vmatpush1.msra.mxu0 0.0
        %943 = vmatprep.subr.mxu0 0.0
        %944 = vmatpush1.msra.mxu0 0.0
        %945 = vmatprep.subr.mxu0 0.0
        %946 = vmatpush1.msra.mxu0 0.0
        %947 = vmatprep.subr.mxu0 0.0
        %948 = vmatpush1.msra.mxu0 0.0
        %949 = vmatprep.subr.mxu0 0.0
        %950 = vmatpush1.msra.mxu0 0.0
        %951 = vmatprep.subr.mxu0 0.0
        %952 = vmatpush1.msra.mxu0 0.0
        %953 = vmatprep.subr.mxu0 0.0
        %954 = vmatpush1.msra.mxu0 0.0
        %955 = vmatprep.subr.mxu0 0.0
        %956 = vmatpush1.msra.mxu0 0.0
        %957 = vmatprep.subr.mxu0 0.0
        %958 = vmatpush1.msra.mxu0 0.0
        %959 = vmatprep.subr.mxu0 0.0
        %960 = vmatpush1.msra.mxu0 0.0
        %961 = vmatprep.mubr.f32.mxu0 0.0
        %v962 = vand.u32 %v265, 4294901760
        %963 = vmatmul.mubr.f32.gmra.mrb[0].mxu0 %v962
        %v964 = vpop.f32.mrb[0].mxu0
        %v965 = vadd.f32 %v815, %v964
        %v966 = vpop.f32.mrb[0].mxu0
        %v967 = vadd.f32 %v817, %v966
        %968 = vmatprep.mubr.f32.mxu0 0.0
        %v969 = vand.u32 %v268, 4294901760
        %970 = vmatmul.mubr.f32.gmra.mrb[0].mxu0 %v969
        %v971 = vpop.f32.mrb[0].mxu0
        %v972 = vadd.f32 %v824, %v971
        %v973 = vpop.f32.mrb[0].mxu0
        %v974 = vadd.f32 %v826, %v973
        %975 = vmatprep.mubr.f32.mxu0 0.0
        %v976 = vand.u32 %v271, 4294901760
        %977 = vmatmul.mubr.f32.gmra.mrb[0].mxu0 %v976
        %v978 = vpop.f32.mrb[0].mxu0
        %v979 = vadd.f32 %v833, %v978
        %v980 = vpop.f32.mrb[0].mxu0
        %v981 = vadd.f32 %v835, %v980
        %982 = vmatprep.mubr.f32.mxu0 0.0
        %v983 = vand.u32 %v274, 4294901760
        %984 = vmatmul.mubr.f32.gmra.mrb[0].mxu0 %v983
        %v985 = vpop.f32.mrb[0].mxu0
        %v986 = vadd.f32 %v842, %v985
        %v987 = vpop.f32.mrb[0].mxu0
        %v988 = vadd.f32 %v844, %v987
        %989 = vmatprep.mubr.f32.mxu0 0.0
        %v990 = vand.u32 %v277, 4294901760
        %991 = vmatmul.mubr.f32.gmra.mrb[0].mxu0 %v990
        %v992 = vpop.f32.mrb[0].mxu0
        %v993 = vadd.f32 %v851, %v992
        %v994 = vpop.f32.mrb[0].mxu0
        %v995 = vadd.f32 %v853, %v994
        %996 = vmatprep.mubr.f32.mxu0 0.0
        %v997 = vand.u32 %v280, 4294901760
        %998 = vmatmul.mubr.f32.gmra.mrb[0].mxu0 %v997
        %v999 = vpop.f32.mrb[0].mxu0
        %v1000 = vadd.f32 %v860, %v999
        %v1001 = vpop.f32.mrb[0].mxu0
        %v1002 = vadd.f32 %v862, %v1001
        %1003 = vmatprep.mubr.f32.mxu0 0.0
        %v1004 = vand.u32 %v283, 4294901760
        %1005 = vmatmul.mubr.f32.gmra.mrb[0].mxu0 %v1004
        %v1006 = vpop.f32.mrb[0].mxu0
        %v1007 = vadd.f32 %v869, %v1006
        %v1008 = vpop.f32.mrb[0].mxu0
        %v1009 = vadd.f32 %v871, %v1008
        %1010 = vmatprep.mubr.f32.mxu0 0.0
        %v1011 = vand.u32 %v286, 4294901760
        %1012 = vmatmul.mubr.f32.gmra.mrb[0].mxu0 %v1011
        %v1013 = vpop.f32.mrb[0].mxu0
        %v1014 = vadd.f32 %v878, %v1013
        %v1015 = vpop.f32.mrb[0].mxu0
        %v1016 = vadd.f32 %v880, %v1015
        %1017 = vmatprep.mubr.f32.mxu0 0.0
        %v1018 = vand.u32 %v289, 4294901760
        %1019 = vmatmul.mubr.f32.gmra.mrb[0].mxu0 %v1018
        %v1020 = vpop.f32.mrb[0].mxu0
        %v1021 = vadd.f32 %v887, %v1020
        %v1022 = vpop.f32.mrb[0].mxu0
        %v1023 = vadd.f32 %v889, %v1022
        %1024 = vdwg.mxu0
        %v1025 = vand.u32 %v296, 4294901760
        %1026 = vmatprep.subr.mxu0 %v1025
        %v1027 = vand.u32 %v293, 4294901760
        %1028 = vmatpush1.msra.mxu0 %v1027
        %1029 = vmatprep.subr.mxu0 0.0
        %1030 = vmatpush1.msra.mxu0 0.0
        %1031 = vmatprep.subr.mxu0 0.0
        %1032 = vmatpush1.msra.mxu0 0.0
        %1033 = vmatprep.subr.mxu0 0.0
        %1034 = vmatpush1.msra.mxu0 0.0
        %1035 = vmatprep.subr.mxu0 0.0
        %1036 = vmatpush1.msra.mxu0 0.0
        %1037 = vmatprep.subr.mxu0 0.0
        %1038 = vmatpush1.msra.mxu0 0.0
        %1039 = vmatprep.subr.mxu0 0.0
        %1040 = vmatpush1.msra.mxu0 0.0
        %1041 = vmatprep.subr.mxu0 0.0
        %1042 = vmatpush1.msra.mxu0 0.0
        %1043 = vmatprep.subr.mxu0 0.0
        %1044 = vmatpush1.msra.mxu0 0.0
        %1045 = vmatprep.subr.mxu0 0.0
        %1046 = vmatpush1.msra.mxu0 0.0
        %1047 = vmatprep.subr.mxu0 0.0
        %1048 = vmatpush1.msra.mxu0 0.0
        %1049 = vmatprep.subr.mxu0 0.0
        %1050 = vmatpush1.msra.mxu0 0.0
        %1051 = vmatprep.subr.mxu0 0.0
        %1052 = vmatpush1.msra.mxu0 0.0
        %1053 = vmatprep.subr.mxu0 0.0
        %1054 = vmatpush1.msra.mxu0 0.0
        %1055 = vmatprep.subr.mxu0 0.0
        %1056 = vmatpush1.msra.mxu0 0.0
        %1057 = vmatprep.subr.mxu0 0.0
        %1058 = vmatpush1.msra.mxu0 0.0
        %1059 = vmatprep.subr.mxu0 0.0
        %1060 = vmatpush1.msra.mxu0 0.0
        %1061 = vmatprep.subr.mxu0 0.0
        %1062 = vmatpush1.msra.mxu0 0.0
        %1063 = vmatprep.subr.mxu0 0.0
        %1064 = vmatpush1.msra.mxu0 0.0
        %1065 = vmatprep.subr.mxu0 0.0
        %1066 = vmatpush1.msra.mxu0 0.0
        %1067 = vmatprep.subr.mxu0 0.0
        %1068 = vmatpush1.msra.mxu0 0.0
        %1069 = vmatprep.subr.mxu0 0.0
        %1070 = vmatpush1.msra.mxu0 0.0
        %1071 = vmatprep.subr.mxu0 0.0
        %1072 = vmatpush1.msra.mxu0 0.0
        %1073 = vmatprep.subr.mxu0 0.0
        %1074 = vmatpush1.msra.mxu0 0.0
        %1075 = vmatprep.subr.mxu0 0.0
        %1076 = vmatpush1.msra.mxu0 0.0
        %1077 = vmatprep.subr.mxu0 0.0
        %1078 = vmatpush1.msra.mxu0 0.0
        %1079 = vmatprep.subr.mxu0 0.0
        %1080 = vmatpush1.msra.mxu0 0.0
        %1081 = vmatprep.subr.mxu0 0.0
        %1082 = vmatpush1.msra.mxu0 0.0
        %1083 = vmatprep.subr.mxu0 0.0
        %1084 = vmatpush1.msra.mxu0 0.0
        %1085 = vmatprep.subr.mxu0 0.0
        %1086 = vmatpush1.msra.mxu0 0.0
        %1087 = vmatprep.subr.mxu0 0.0
        %1088 = vmatpush1.msra.mxu0 0.0
        %1089 = vmatprep.subr.mxu0 0.0
        %1090 = vmatpush1.msra.mxu0 0.0
        %1091 = vmatprep.mubr.f32.mxu0 0.0
        %v1092 = vand.u32 %v265, 4294901760
        %1093 = vmatmul.mubr.f32.gmra.mrb[0].mxu0 %v1092
        %v1094 = vpop.f32.mrb[0].mxu0
        %v1095 = vadd.f32 %v965, %v1094
        %v1096 = vpop.f32.mrb[0].mxu0
        %v1097 = vadd.f32 %v967, %v1096
        %1098 = vmatprep.mubr.f32.mxu0 0.0
        %v1099 = vand.u32 %v268, 4294901760
        %1100 = vmatmul.mubr.f32.gmra.mrb[0].mxu0 %v1099
        %v1101 = vpop.f32.mrb[0].mxu0
        %v1102 = vadd.f32 %v972, %v1101
        %v1103 = vpop.f32.mrb[0].mxu0
        %v1104 = vadd.f32 %v974, %v1103
        %1105 = vmatprep.mubr.f32.mxu0 0.0
        %v1106 = vand.u32 %v271, 4294901760
        %1107 = vmatmul.mubr.f32.gmra.mrb[0].mxu0 %v1106
        %v1108 = vpop.f32.mrb[0].mxu0
        %v1109 = vadd.f32 %v979, %v1108
        %v1110 = vpop.f32.mrb[0].mxu0
        %v1111 = vadd.f32 %v981, %v1110
        %1112 = vmatprep.mubr.f32.mxu0 0.0
        %v1113 = vand.u32 %v274, 4294901760
        %1114 = vmatmul.mubr.f32.gmra.mrb[0].mxu0 %v1113
        %v1115 = vpop.f32.mrb[0].mxu0
        %v1116 = vadd.f32 %v986, %v1115
        %v1117 = vpop.f32.mrb[0].mxu0
        %v1118 = vadd.f32 %v988, %v1117
        %1119 = vmatprep.mubr.f32.mxu0 0.0
        %v1120 = vand.u32 %v277, 4294901760
        %1121 = vmatmul.mubr.f32.gmra.mrb[0].mxu0 %v1120
        %v1122 = vpop.f32.mrb[0].mxu0
        %v1123 = vadd.f32 %v993, %v1122
        %v1124 = vpop.f32.mrb[0].mxu0
        %v1125 = vadd.f32 %v995, %v1124
        %1126 = vmatprep.mubr.f32.mxu0 0.0
        %v1127 = vand.u32 %v280, 4294901760
        %1128 = vmatmul.mubr.f32.gmra.mrb[0].mxu0 %v1127
        %v1129 = vpop.f32.mrb[0].mxu0
        %v1130 = vadd.f32 %v1000, %v1129
        %v1131 = vpop.f32.mrb[0].mxu0
        %v1132 = vadd.f32 %v1002, %v1131
        %1133 = vmatprep.mubr.f32.mxu0 0.0
        %v1134 = vand.u32 %v283, 4294901760
        %1135 = vmatmul.mubr.f32.gmra.mrb[0].mxu0 %v1134
        %v1136 = vpop.f32.mrb[0].mxu0
        %v1137 = vadd.f32 %v1007, %v1136
        %v1138 = vpop.f32.mrb[0].mxu0
        %v1139 = vadd.f32 %v1009, %v1138
        %1140 = vmatprep.mubr.f32.mxu0 0.0
        %v1141 = vand.u32 %v286, 4294901760
        %1142 = vmatmul.mubr.f32.gmra.mrb[0].mxu0 %v1141
        %v1143 = vpop.f32.mrb[0].mxu0
        %v1144 = vadd.f32 %v1014, %v1143
        %v1145 = vpop.f32.mrb[0].mxu0
        %v1146 = vadd.f32 %v1016, %v1145
        %1147 = vmatprep.mubr.f32.mxu0 0.0
        %v1148 = vand.u32 %v289, 4294901760
        %1149 = vmatmul.mubr.f32.gmra.mrb[0].mxu0 %v1148
        %v1150 = vpop.f32.mrb[0].mxu0
        %v1151 = vadd.f32 %v1021, %v1150
        %v1152 = vpop.f32.mrb[0].mxu0
        %v1153 = vadd.f32 %v1023, %v1152
        %1154 = vdwg.mxu0
        %v1156 = vlaneseq
        %v1157 = vshrl.u32 %v1156, 7
        %v1158 = vsub.s32 0, %v1157
        %v1159 = vrot.slane %v239, %v1158
        %v1160 = vlaneseq
        %v1161 = vshrl.u32 %v1160, 7
        %v1162 = vsub.s32 1, %v1161
        %v1163 = vrot.slane %v239, %v1162
        %1164 = vrot.lane.b32.xlu0 %v1159, 17
        %v1165 = vpop.permute.xlu0 %1164
        %1166 = vrot.lane.b32.xlu0 %v1163, 17
        %v1167 = vpop.permute.xlu0 %1166
        %vm1168 = vcmask 138240
        %v1169 = vsel %vm1168, %v1165, %v1167
        %v1172 = vmul.f32 %v1095, %v1165
        %v1173 = vmul.f32 %v1097, %v1169
        %v1174 = vld [vmem:[#allocation3] sm:$0xff]
        %v1175 = vld [vmem:[#allocation3 + $0x8] sm:$0xff]
        %1178 = vrot.lane.b32.xlu0 %v1172, 111
        %v1179 = vpop.permute.xlu0 %1178
        %1180 = vrot.lane.b32.xlu0 %v1173, 111
        %v1181 = vpop.permute.xlu0 %1180
        %vm1182 = vcmask 908288
        %v1183 = vsel %vm1182, %v1179, %v1181
        %v1186 = vadd.f32 %v1174, %v1183
        %v1187 = vadd.f32 %v1175, %v1181
        %1188 = vst [vmem:[#allocation3] sm:$0xff] %v1186
        %1189 = vst.msk [vmem:[#allocation3 + $0x8] sm:$0xff] %vm1182, %v1187
        %v1191 = vlaneseq
        %v1192 = vshrl.u32 %v1191, 7
        %v1193 = vsub.s32 0, %v1192
        %v1194 = vrot.slane %v244, %v1193
        %v1195 = vlaneseq
        %v1196 = vshrl.u32 %v1195, 7
        %v1197 = vsub.s32 1, %v1196
        %v1198 = vrot.slane %v244, %v1197
        %1199 = vrot.lane.b32.xlu0 %v1194, 16
        %v1200 = vpop.permute.xlu0 %1199
        %1201 = vrot.lane.b32.xlu0 %v1198, 16
        %v1202 = vpop.permute.xlu0 %1201
        %vm1203 = vcmask 130048
        %v1204 = vsel %vm1203, %v1200, %v1202
        %v1207 = vmul.f32 %v1102, %v1200
        %v1208 = vmul.f32 %v1104, %v1204
        %v1209 = vld [vmem:[#allocation3] sm:$0xff]
        %v1210 = vld [vmem:[#allocation3 + $0x8] sm:$0xff]
        %1213 = vrot.lane.b32.xlu0 %v1207, 112
        %v1214 = vpop.permute.xlu0 %1213
        %1215 = vrot.lane.b32.xlu0 %v1208, 112
        %v1216 = vpop.permute.xlu0 %1215
        %vm1217 = vcmask 916480
        %v1218 = vsel %vm1217, %v1214, %v1216
        %v1221 = vadd.f32 %v1209, %v1218
        %v1222 = vadd.f32 %v1210, %v1216
        %1223 = vst [vmem:[#allocation3] sm:$0xff] %v1221
        %1224 = vst.msk [vmem:[#allocation3 + $0x8] sm:$0xff] %vm1217, %v1222
        %v1226 = vlaneseq
        %v1227 = vshrl.u32 %v1226, 7
        %v1228 = vsub.s32 0, %v1227
        %v1229 = vrot.slane %v249, %v1228
        %v1230 = vlaneseq
        %v1231 = vshrl.u32 %v1230, 7
        %v1232 = vsub.s32 1, %v1231
        %v1233 = vrot.slane %v249, %v1232
        %1234 = vrot.lane.b32.xlu0 %v1229, 15
        %v1235 = vpop.permute.xlu0 %1234
        %1236 = vrot.lane.b32.xlu0 %v1233, 15
        %v1237 = vpop.permute.xlu0 %1236
        %vm1238 = vcmask 121856
        %v1239 = vsel %vm1238, %v1235, %v1237
        %v1242 = vmul.f32 %v1109, %v1235
        %v1243 = vmul.f32 %v1111, %v1239
        %v1244 = vld [vmem:[#allocation3] sm:$0xff]
        %v1245 = vld [vmem:[#allocation3 + $0x8] sm:$0xff]
        %1248 = vrot.lane.b32.xlu0 %v1242, 113
        %v1249 = vpop.permute.xlu0 %1248
        %1250 = vrot.lane.b32.xlu0 %v1243, 113
        %v1251 = vpop.permute.xlu0 %1250
        %vm1252 = vcmask 924672
        %v1253 = vsel %vm1252, %v1249, %v1251
        %v1256 = vadd.f32 %v1244, %v1253
        %v1257 = vadd.f32 %v1245, %v1251
        %1258 = vst [vmem:[#allocation3] sm:$0xff] %v1256
        %1259 = vst.msk [vmem:[#allocation3 + $0x8] sm:$0xff] %vm1252, %v1257
        %1260 = vrot.lane.b32.xlu0 %v1159, 1
        %v1261 = vpop.permute.xlu0 %1260
        %1262 = vrot.lane.b32.xlu0 %v1163, 1
        %v1263 = vpop.permute.xlu0 %1262
        %vm1264 = vcmask 7168
        %v1265 = vsel %vm1264, %v1261, %v1263
        %v1268 = vmul.f32 %v1116, %v1261
        %v1269 = vmul.f32 %v1118, %v1265
        %v1270 = vld [vmem:[#allocation3] sm:$0xff]
        %v1271 = vld [vmem:[#allocation3 + $0x8] sm:$0xff]
        %1274 = vrot.lane.b32.xlu0 %v1268, 127
        %v1275 = vpop.permute.xlu0 %1274
        %1276 = vrot.lane.b32.xlu0 %v1269, 127
        %v1277 = vpop.permute.xlu0 %1276
        %vm1278 = vcmask 1039360
        %v1279 = vsel %vm1278, %v1275, %v1277
        %v1282 = vadd.f32 %v1270, %v1279
        %v1283 = vadd.f32 %v1271, %v1277
        %1284 = vst [vmem:[#allocation3] sm:$0xff] %v1282
        %1285 = vst.msk [vmem:[#allocation3 + $0x8] sm:$0xff] %vm1278, %v1283
        %v1288 = vmul.f32 %v1123, %v1194
        %v1289 = vmul.f32 %v1125, %v1198
        %v1290 = vld [vmem:[#allocation3] sm:$0xff]
        %v1291 = vld [vmem:[#allocation3 + $0x8] sm:$0xff]
        %v1292 = vadd.f32 %v1290, %v1288
        %v1293 = vadd.f32 %v1291, %v1289
        %1294 = vst [vmem:[#allocation3] sm:$0xff] %v1292
        %1295 = vst [vmem:[#allocation3 + $0x8] sm:$0xff] %v1293
        %1296 = vrot.lane.b32.xlu0 %v1229, 127
        %v1297 = vpop.permute.xlu0 %1296
        %1298 = vrot.lane.b32.xlu0 %v1233, 127
        %v1299 = vpop.permute.xlu0 %1298
        %v1300 = vsel %vm1278, %v1297, %v1299
        %v1303 = vmul.f32 %v1130, %v1300
        %v1304 = vmul.f32 %v1132, %v1299
        %v1305 = vld [vmem:[#allocation3] sm:$0xff]
        %v1306 = vld [vmem:[#allocation3 + $0x8] sm:$0xff]
        %1309 = vrot.lane.b32.xlu0 %v1303, 1
        %v1310 = vpop.permute.xlu0 %1309
        %1311 = vrot.lane.b32.xlu0 %v1304, 1
        %v1312 = vpop.permute.xlu0 %1311
        %v1313 = vsel %vm1264, %v1310, %v1312
        %v1316 = vadd.f32 %v1305, %v1310
        %v1317 = vadd.f32 %v1306, %v1313
        %vm1318 = vcmask 1047560
        %1319 = vst.msk [vmem:[#allocation3] sm:$0xff] %vm1318, %v1316
        %1320 = vst [vmem:[#allocation3 + $0x8] sm:$0xff] %v1317
        %1321 = vrot.lane.b32.xlu0 %v1159, 113
        %v1322 = vpop.permute.xlu0 %1321
        %1323 = vrot.lane.b32.xlu0 %v1163, 113
        %v1324 = vpop.permute.xlu0 %1323
        %v1325 = vsel %vm1252, %v1322, %v1324
        %v1328 = vmul.f32 %v1137, %v1325
        %v1329 = vmul.f32 %v1139, %v1324
        %v1330 = vld [vmem:[#allocation3] sm:$0xff]
        %v1331 = vld [vmem:[#allocation3 + $0x8] sm:$0xff]
        %1334 = vrot.lane.b32.xlu0 %v1328, 15
        %v1335 = vpop.permute.xlu0 %1334
        %1336 = vrot.lane.b32.xlu0 %v1329, 15
        %v1337 = vpop.permute.xlu0 %1336
        %v1338 = vsel %vm1238, %v1335, %v1337
        %v1341 = vadd.f32 %v1330, %v1335
        %v1342 = vadd.f32 %v1331, %v1338
        %vm1343 = vcmask 1047672
        %1344 = vst.msk [vmem:[#allocation3] sm:$0xff] %vm1343, %v1341
        %1345 = vst [vmem:[#allocation3 + $0x8] sm:$0xff] %v1342
        %1346 = vrot.lane.b32.xlu0 %v1194, 112
        %v1347 = vpop.permute.xlu0 %1346
        %1348 = vrot.lane.b32.xlu0 %v1198, 112
        %v1349 = vpop.permute.xlu0 %1348
        %v1350 = vsel %vm1217, %v1347, %v1349
        %v1353 = vmul.f32 %v1144, %v1350
        %v1354 = vmul.f32 %v1146, %v1349
        %v1355 = vld [vmem:[#allocation3] sm:$0xff]
        %v1356 = vld [vmem:[#allocation3 + $0x8] sm:$0xff]
        %1359 = vrot.lane.b32.xlu0 %v1353, 16
        %v1360 = vpop.permute.xlu0 %1359
        %1361 = vrot.lane.b32.xlu0 %v1354, 16
        %v1362 = vpop.permute.xlu0 %1361
        %v1363 = vsel %vm1203, %v1360, %v1362
        %v1366 = vadd.f32 %v1355, %v1360
        %v1367 = vadd.f32 %v1356, %v1363
        %vm1368 = vcmask 1047680
        %1369 = vst.msk [vmem:[#allocation3] sm:$0xff] %vm1368, %v1366
        %1370 = vst [vmem:[#allocation3 + $0x8] sm:$0xff] %v1367
        %1371 = vrot.lane.b32.xlu0 %v1229, 111
        %v1372 = vpop.permute.xlu0 %1371
        %1373 = vrot.lane.b32.xlu0 %v1233, 111
        %v1374 = vpop.permute.xlu0 %1373
        %v1375 = vsel %vm1182, %v1372, %v1374
        %v1378 = vmul.f32 %v1151, %v1375
        %v1379 = vmul.f32 %v1153, %v1374
        %v1380 = vld [vmem:[#allocation3] sm:$0xff]
        %v1381 = vld [vmem:[#allocation3 + $0x8] sm:$0xff]
        %1384 = vrot.lane.b32.xlu0 %v1378, 17
        %v1385 = vpop.permute.xlu0 %1384
        %1386 = vrot.lane.b32.xlu0 %v1379, 17
        %v1387 = vpop.permute.xlu0 %1386
        %v1388 = vsel %vm1168, %v1385, %v1387
        %v1391 = vadd.f32 %v1380, %v1385
        %v1392 = vadd.f32 %v1381, %v1388
        %vm1393 = vcmask 1047688
        %1394 = vst.msk [vmem:[#allocation3] sm:$0xff] %vm1393, %v1391
        %1395 = vst [vmem:[#allocation3 + $0x8] sm:$0xff] %v1392
        %v1396 = vld [vmem:[%s2] sm:$0xff]
        %v1397 = vld [vmem:[#allocation3] sm:$0xff]
        %v1398 = vld [vmem:[#allocation3 + $0x8] sm:$0xff]
        %1400 = vset.pattern.permute.xlu0 0
        %1401 = vperm.xlu0 %1400, %v1396
        %v1402 = vpop.permute.xlu0 %1401
        %v1404 = vadd.f32 %v1397, %v1402
        %v1405 = vadd.f32 %v1398, %v1402
        %1406 = vst [vmem:[%s190] sm:$0xff] %v1404
        %1407 = vst [vmem:[%s190 + $0x8] sm:$0xff] %v1405
        %s1408 = sand.u32 %s115, 1
        %s1409 = scalar_lea.sflag [#allocation5], %s1408
        %s1410 = sand.u32 %s115, 1
        %s1411 = smul.addr %s1410, 16
        %s1412 = scalar_lea.vmem [#allocation4], %s1411
        // Predicated region
        $region37: #{tpu_custom_call.1} parent=35 // pred_check
          %p1413 = pneg %p125
        $region38: #{tpu_custom_call.1} parent=35 // pred_check_branch
          %1415 = sbr.rel (%p1413) target = $region40
        $region39: #{tpu_custom_call.1} parent=35 // pred_region
          %s1417 = ssub.s32 256, 256
          %1418 = vsyncadd %s1409, %s1417
          %s1419 = smul.addr %s18, 2
          %s1420 = smul.addr %s1419, 128
          %s1421 = scalar_lea.hbm %s4, %s1420
          %s1423 = sshll.u32 %s1412, 4
          %s1424 = int_to_ptr.vmem [resolvable:$true] %s1423
          %1426 = dma.vmem_to_hbm [thread:$0]  %s1424, 256, %s1421, %s1409
        $region40: #{tpu_custom_call.1} parent=35 // pred_fallthru
          _
      $region36: #{tpu_custom_call.1} parent=5 // pred_fallthru
        _
      %p1427 = scmp.le.s32.totalorder 2, %s13
      // Predicated region
      $region41: #{tpu_custom_call.1} parent=5 // pred_check
        %p1428 = pneg %p1427
      $region42: #{tpu_custom_call.1} parent=5 // pred_check_branch
        %1430 = sbr.rel (%p1428) target = $region44
      $region43: #{tpu_custom_call.1} parent=5 // pred_region
        %s1431 = ssub.s32 %s13, 2
        // Predicated region
        $region45: #{tpu_custom_call.1} parent=43 // pred_check
          %p1432 = pneg %p131
        $region46: #{tpu_custom_call.1} parent=43 // pred_check_branch
          %1434 = sbr.rel (%p1432) target = $region48
        $region47: #{tpu_custom_call.1} parent=43 // pred_region
          %s1435 = sand.u32 %s116, 1
          %s1436 = scalar_lea.sflag [#allocation5], %s1435
          %s1437 = sand.u32 %s116, 1
          %s1438 = smul.addr %s1437, 16
          %s1439 = scalar_lea.vmem [#allocation4], %s1438
          %1440 = dma.done %s1436, 256
        $region48: #{tpu_custom_call.1} parent=43 // pred_fallthru
          _
      $region44: #{tpu_custom_call.1} parent=5 // pred_fallthru
        _
    $region6: #{tpu_custom_call.1} parent=1 // loop_footer
      %s17 = sadd.s32 1, %s13
    $region7: #{tpu_custom_call.1} parent=1 // loop_footer_branch
      %12 = sbr.rel target = $region3
    $region8: #{tpu_custom_call.1} parent=1 // loop_exit
      _
    %1441 = vsyncpa [#allocation5], 1
    %s1442 = scalar_lea.sflag [#allocation5], 1
    %1443 = vsyncpa %s1442, 1

</llo_original>
